<compile_context>
chip_gen: v7x
topology: tpu7x:2x2x1
jax: 0.10.0
libtpu: 0.0.40
codegen_flags: <defaults>
</compile_context>

<pallas_src>
from functools import partial

import jax
import jax.numpy as jnp
from jax.experimental import pallas as pl
from jax.experimental.pallas import tpu as pltpu


def _round_up(x, m):
    return ((x + m - 1) // m) * m


def _tile_and_vmem_defaults():
    """Pick TILE_N / vmem_limit per TPU generation (VMEM capacity)."""
    try:
        cap = pltpu.get_tpu_info().vmem_capacity_bytes
    except Exception:
        return 1024, 48 * 1024 * 1024          # conservative: fits all gens
    if cap <= 64 * 1024 * 1024:                # v7x-class (64 MiB VMEM)
        return 1024, 40 * 1024 * 1024
    return 2048, 96 * 1024 * 1024              # v5e / v6e (128 MiB VMEM)


def _const_block_spec(a):
    """Whole-array block, constant index map, single-buffered (fetched once)."""
    ndim = a.ndim
    index_map = lambda i: (0,) * ndim
    try:
        return pl.BlockSpec(a.shape, index_map, pipeline_mode=pl.Buffered(1))
    except TypeError:  # older jax without pipeline_mode on BlockSpec
        return pl.BlockSpec(a.shape, index_map)


def attrimil_kernel(n_valid, n_classes,
                    h_ref, w1_ref, b1_ref, w2_ref, b2_ref,
                    wa_ref, ba_ref, wb_ref, bb_ref, wc_ref, bc_ref,
                    wcls_ref, bcls_ref,
                    attr_ref, nd_ref):
    tile = pl.program_id(0)
    tn = h_ref.shape[0]
    d2 = wa_ref.shape[1] // n_classes
    bf = jnp.bfloat16

    # mask rows beyond the true instance count (last block over-reads)
    rows = tile * tn + jax.lax.broadcasted_iota(jnp.int32, (tn, 1), 0)
    valid = rows < n_valid
    h = jnp.where(valid, h_ref[...], 0.0)                       # (TN, dim) f32
    hb = h.astype(bf)

    # adaptor: h <- h + Linear(ReLU(Linear(h)))   (residual add in f32)
    z = jnp.maximum(
        jnp.dot(hb, w1_ref[...], preferred_element_type=jnp.float32)
        + b1_ref[...], 0.0)                                     # (TN, D2) f32
    h = h + jnp.dot(z.astype(bf), w2_ref[...],
                    preferred_element_type=jnp.float32) + b2_ref[...]
    hb = h.astype(bf)                                           # (TN, dim)

    # per-class instance classifiers, all classes in one matmul
    inst = jnp.dot(hb, wcls_ref[...],
                   preferred_element_type=jnp.float32) + bcls_ref[...]  # (TN, C)

    # gated attention, chunked per class: live temporaries stay O(TN x D2)
    a_cols = []
    for c in range(n_classes):
        lo = c * d2
        a_pre = jnp.dot(hb, wa_ref[:, lo:lo + d2],
                        preferred_element_type=jnp.float32) + ba_ref[:, lo:lo + d2]
        b_pre = jnp.dot(hb, wb_ref[:, lo:lo + d2],
                        preferred_element_type=jnp.float32) + bb_ref[:, lo:lo + d2]
        gated = jnp.tanh(a_pre) * jax.nn.sigmoid(b_pre)         # f32 (VPU/EUP)
        # attention_c (Linear(D2 -> 1)) as VPU scale + XLU lane reduction,
        # instead of a thin-N MXU matmul against a block-diagonal weight.
        a_cols.append(jnp.sum(gated * wc_ref[:, lo:lo + d2],
                              axis=1, keepdims=True))           # (TN, 1)
    A_mat = jnp.concatenate(a_cols, axis=1) + bc_ref[...]       # (TN, C)

    # NOTE: exp is deliberately unstabilized to match the PyTorch forward
    # semantics (attr = inst * exp(A); logits = sum(attr)/sum(exp(A)) + bias).
    eA = jnp.where(valid, jnp.exp(A_mat), 0.0)                  # (TN, C)
    attr = jnp.where(valid, inst * eA, 0.0)                     # (TN, C)

    attr_ref[...] = attr.T[None, :, :]                          # (1, C, TN) lane-dense
    num = jnp.sum(attr, axis=0, keepdims=True)                  # (1, C)
    den = jnp.sum(eA, axis=0, keepdims=True)                    # (1, C)
    nd_ref[...] = jnp.concatenate([num, den], axis=0)[None, :, :]  # (1, 2, C)


def init_params(key, dim, n_classes):
    d2 = dim // 2
    ks = jax.random.split(key, 9)

    def rnd(k, shape, scale=0.1):
        return scale * jax.random.normal(k, shape, dtype=jnp.float32)

    return {
        "w1": rnd(ks[0], (dim, d2)),
        "b1": rnd(ks[1], (d2,)),
        "w2": rnd(ks[2], (d2, dim)),
        "b2": rnd(ks[3], (dim,)),
        "wa": rnd(ks[4], (n_classes, dim, d2)),
        "ba": jnp.zeros((n_classes, d2), jnp.float32),
        "wb": rnd(ks[5], (n_classes, dim, d2)),
        "bb": jnp.zeros((n_classes, d2), jnp.float32),
        "wc": rnd(ks[6], (n_classes, d2)),
        "bc": rnd(ks[7], (n_classes,)),
        "wcls": rnd(ks[8], (dim, n_classes)),
        "bcls": jnp.zeros((n_classes,), jnp.float32),
        "bias": jnp.zeros((n_classes,), jnp.float32),     # nn.Parameter zeros
    }


def prepare_params(params):
    """One-time weight prep (per model, NOT per call): bf16 casts + per-class
    concatenation of the attention weights into wide MXU operands."""
    bf = jnp.bfloat16
    dim = params["w1"].shape[0]
    C = params["bias"].shape[0]
    d2 = dim // 2
    cd = C * d2
    return {
        "w1": params["w1"].astype(bf),
        "b1": params["b1"][None, :].astype(jnp.float32),
        "w2": params["w2"].astype(bf),
        "b2": params["b2"][None, :].astype(jnp.float32),
        # class-major layout: columns [c*D2:(c+1)*D2] == class c's weights
        "wa": jnp.transpose(params["wa"], (1, 0, 2)).reshape(dim, cd).astype(bf),
        "ba": params["ba"].reshape(1, cd).astype(jnp.float32),
        "wb": jnp.transpose(params["wb"], (1, 0, 2)).reshape(dim, cd).astype(bf),
        "bb": params["bb"].reshape(1, cd).astype(jnp.float32),
        "wc": params["wc"].reshape(1, cd).astype(jnp.float32),   # flat, used on VPU
        "bc": params["bc"][None, :].astype(jnp.float32),
        "wcls": params["wcls"].astype(bf),
        "bcls": params["bcls"][None, :].astype(jnp.float32),
        "bias": params["bias"].astype(jnp.float32),
    }


def attrimil_forward(h, prepared, *, tile_n=None, vmem_limit_bytes=None):
    N, dim = h.shape
    C = int(prepared["bias"].shape[0])
    D2 = dim // 2

    d_tile, d_vmem = _tile_and_vmem_defaults()
    if tile_n is None:
        tile_n = d_tile
    if vmem_limit_bytes is None:
        vmem_limit_bytes = d_vmem
    # TILE_N: multiple of 128 (lane-dense attr writes), never larger than needed
    tile_n = max(128, _round_up(min(tile_n, _round_up(N, 128)), 128))
    n_tiles = pl.cdiv(N, tile_n)

    p = prepared
    args = (h.astype(jnp.float32), p["w1"], p["b1"], p["w2"], p["b2"],
            p["wa"], p["ba"], p["wb"], p["bb"], p["wc"], p["bc"],
            p["wcls"], p["bcls"])

    in_specs = ([pl.BlockSpec((tile_n, dim), lambda i: (i, 0))]
                + [_const_block_spec(a) for a in args[1:]])
    out_specs = (pl.BlockSpec((1, C, tile_n), lambda i: (0, 0, i)),
                 pl.BlockSpec((1, 2, C), lambda i: (i, 0, 0)))
    out_shape = (jax.ShapeDtypeStruct((1, C, N), jnp.float32),
                 jax.ShapeDtypeStruct((n_tiles, 2, C), jnp.float32))

    # advisory cost estimate so XLA schedules surrounding glue sensibly
    flops = (4 * N * dim * D2            # adaptor
             + 2 * N * dim * C           # instance classifiers
             + 4 * N * dim * C * D2      # gated attention a + b
             + 2 * N * C * D2)           # per-class wc reduction (VPU/XLU)
    transcendentals = N * C * (2 * D2 + 1)          # tanh + sigmoid + exp
    bytes_accessed = int(sum(int(a.size) * a.dtype.itemsize for a in args)
                         + 4 * (C * N + 2 * n_tiles * C))

    attr, nd = pl.pallas_call(
        partial(attrimil_kernel, N, C),
        grid=(n_tiles,),
        in_specs=in_specs,
        out_specs=out_specs,
        out_shape=out_shape,
        compiler_params=pltpu.CompilerParams(
            dimension_semantics=("parallel",),
            vmem_limit_bytes=vmem_limit_bytes),
        cost_estimate=pl.CostEstimate(flops=flops,
                                      transcendentals=transcendentals,
                                      bytes_accessed=bytes_accessed),
    )(*args)

    num = jnp.sum(nd[:, 0, :], axis=0)                    # (C,)
    den = jnp.sum(nd[:, 1, :], axis=0)                    # (C,)
    logits = (num / den + p["bias"])[None, :]             # (1, C)
    Y_prob = jax.nn.softmax(logits, axis=1)
    Y_hat = jnp.argmax(logits, axis=1, keepdims=True)     # torch.topk(., 1)[1]
    results_dict = {}
    return logits, Y_prob, Y_hat, attr, results_dict


def attrimil_reference_bf16(h, p):
    """Pure-JAX reference with the same bf16-on-MXU / f32-elsewhere split."""
    bf = jnp.bfloat16
    C = p["bias"].shape[0]
    hb = h.astype(bf)
    z = jnp.maximum(jnp.dot(hb, p["w1"].astype(bf),
                            preferred_element_type=jnp.float32) + p["b1"], 0.0)
    h2 = h + jnp.dot(z.astype(bf), p["w2"].astype(bf),
                     preferred_element_type=jnp.float32) + p["b2"]
    h2b = h2.astype(bf)
    inst = jnp.dot(h2b, p["wcls"].astype(bf),
                   preferred_element_type=jnp.float32) + p["bcls"]
    A_cols = []
    for c in range(C):
        a = jnp.tanh(jnp.dot(h2b, p["wa"][c].astype(bf),
                             preferred_element_type=jnp.float32) + p["ba"][c])
        b = jax.nn.sigmoid(jnp.dot(h2b, p["wb"][c].astype(bf),
                                   preferred_element_type=jnp.float32) + p["bb"][c])
        # matches the kernel: f32 elementwise scale + f32 reduction
        A_cols.append(jnp.sum((a * b) * p["wc"][c][None, :], axis=1) + p["bc"][c])
    A_mat = jnp.stack(A_cols, axis=1)
    eA = jnp.exp(A_mat)
    attr = inst * eA
    logits = (jnp.sum(attr, axis=0) / jnp.sum(eA, axis=0) + p["bias"])[None]
    return logits, attr.T[None]


def attrimil_reference_f32(h, p):
    """Full-precision reference matching the PyTorch forward semantics."""
    C = p["bias"].shape[0]
    z = jnp.maximum(h @ p["w1"] + p["b1"], 0.0)
    h2 = h + z @ p["w2"] + p["b2"]
    inst = h2 @ p["wcls"] + p["bcls"]
    A_cols = []
    for c in range(C):
        a = jnp.tanh(h2 @ p["wa"][c] + p["ba"][c])
        b = jax.nn.sigmoid(h2 @ p["wb"][c] + p["bb"][c])
        A_cols.append((a * b) @ p["wc"][c] + p["bc"][c])
    A_mat = jnp.stack(A_cols, axis=1)
    eA = jnp.exp(A_mat)
    attr = inst * eA
    logits = (jnp.sum(attr, axis=0) / jnp.sum(eA, axis=0) + p["bias"])[None]
    return logits, attr.T[None]


if __name__ == "__main__":
    key = jax.random.PRNGKey(0)
    k_h, k_p, k_h2, k_p2 = jax.random.split(key, 4)

    # --- demo 1: tiny bag, single (partial) tile -> exercises row masking ---
    N, DIM, C = 8, 32, 2
    h = jax.random.normal(k_h, (N, DIM), dtype=jnp.float32)
    params = init_params(k_p, DIM, C)
    prepared = prepare_params(params)

    logits, Y_prob, Y_hat, attr, _ = jax.block_until_ready(
        attrimil_forward(h, prepared))

    # tight check against the bf16-matched reference (same math as the kernel)
    ref_logits, ref_attr = attrimil_reference_bf16(h, params)
    assert jnp.allclose(logits, ref_logits, rtol=5e-3, atol=5e-3), (logits, ref_logits)
    assert jnp.allclose(attr, ref_attr, rtol=5e-3, atol=5e-3)

    # loose semantic check against the full-f32 PyTorch-equivalent forward
    f32_logits, f32_attr = attrimil_reference_f32(h, params)
    assert jnp.allclose(logits, f32_logits, rtol=1e-1, atol=1e-1)
    assert jnp.allclose(attr, f32_attr, rtol=1e-1, atol=1e-1)

    assert Y_prob.shape == (1, C) and Y_hat.shape == (1, 1)
    assert attr.shape == (1, C, N)
    assert bool(jnp.all(jnp.isfinite(logits)))

    # --- demo 2: multiple tiles + partial last tile, 3 classes ---
    N2, DIM2, C2 = 300, 64, 3
    h2 = jax.random.normal(k_h2, (N2, DIM2), dtype=jnp.float32)
    params2 = init_params(k_p2, DIM2, C2)
    prepared2 = prepare_params(params2)

    logits2, _, _, attr2, _ = jax.block_until_ready(
        attrimil_forward(h2, prepared2, tile_n=128))

    ref_logits2, ref_attr2 = attrimil_reference_bf16(h2, params2)
    assert jnp.allclose(logits2, ref_logits2, rtol=5e-3, atol=5e-3)
    assert jnp.allclose(attr2, ref_attr2, rtol=5e-3, atol=5e-3)
    assert attr2.shape == (1, C2, N2)
    assert bool(jnp.all(jnp.isfinite(logits2)))

    print("KERNEL_OK")
</pallas_src>

<mosaic_0001>
module attributes {stable_mosaic.version = 11 : i64} {
  func.func @attrimil_kernel(%arg0: i32, %arg1: memref<128x32xf32, #tpu.memory_space<vmem>>, %arg2: memref<32x16xbf16, #tpu.memory_space<vmem>>, %arg3: memref<1x16xf32, #tpu.memory_space<vmem>>, %arg4: memref<16x32xbf16, #tpu.memory_space<vmem>>, %arg5: memref<1x32xf32, #tpu.memory_space<vmem>>, %arg6: memref<32x32xbf16, #tpu.memory_space<vmem>>, %arg7: memref<1x32xf32, #tpu.memory_space<vmem>>, %arg8: memref<32x32xbf16, #tpu.memory_space<vmem>>, %arg9: memref<1x32xf32, #tpu.memory_space<vmem>>, %arg10: memref<1x32xf32, #tpu.memory_space<vmem>>, %arg11: memref<1x2xf32, #tpu.memory_space<vmem>>, %arg12: memref<32x2xbf16, #tpu.memory_space<vmem>>, %arg13: memref<1x2xf32, #tpu.memory_space<vmem>>, %arg14: memref<1x2x128xf32, #tpu.memory_space<vmem>>, %arg15: memref<1x2x2xf32, #tpu.memory_space<vmem>>) attributes {dimension_semantics = [#tpu.dimension_semantics<parallel>], iteration_bounds = array<i64: 1>, scalar_prefetch = 0 : i64, scratch_operands = 0 : i64, tpu.core_type = #tpu.core_type<tc>, window_params = [{transform_indices = @transform_0, window_bounds = array<i64: 128, 32>}, {pipeline_mode = #tpu.pipeline_mode<synchronous>, transform_indices = @transform_1, window_bounds = array<i64: 32, 16>}, {pipeline_mode = #tpu.pipeline_mode<synchronous>, transform_indices = @transform_2, window_bounds = array<i64: 1, 16>}, {pipeline_mode = #tpu.pipeline_mode<synchronous>, transform_indices = @transform_3, window_bounds = array<i64: 16, 32>}, {pipeline_mode = #tpu.pipeline_mode<synchronous>, transform_indices = @transform_4, window_bounds = array<i64: 1, 32>}, {pipeline_mode = #tpu.pipeline_mode<synchronous>, transform_indices = @transform_5, window_bounds = array<i64: 32, 32>}, {pipeline_mode = #tpu.pipeline_mode<synchronous>, transform_indices = @transform_6, window_bounds = array<i64: 1, 32>}, {pipeline_mode = #tpu.pipeline_mode<synchronous>, transform_indices = @transform_7, window_bounds = array<i64: 32, 32>}, {pipeline_mode = #tpu.pipeline_mode<synchronous>, transform_indices = @transform_8, window_bounds = array<i64: 1, 32>}, {pipeline_mode = #tpu.pipeline_mode<synchronous>, transform_indices = @transform_9, window_bounds = array<i64: 1, 32>}, {pipeline_mode = #tpu.pipeline_mode<synchronous>, transform_indices = @transform_10, window_bounds = array<i64: 1, 2>}, {pipeline_mode = #tpu.pipeline_mode<synchronous>, transform_indices = @transform_11, window_bounds = array<i64: 32, 2>}, {pipeline_mode = #tpu.pipeline_mode<synchronous>, transform_indices = @transform_12, window_bounds = array<i64: 1, 2>}, {transform_indices = @transform_13, window_bounds = array<i64: 1, 2, 128>}, {transform_indices = @transform_14, window_bounds = array<i64: 1, 2, 2>}]} {
    %c128_i32 = arith.constant 128 : i32
    %0 = arith.muli %arg0, %c128_i32 : i32
    %1 = tpu.iota {dimensions = array<i32: 0>} : vector<128x1xi32>
    %2 = vector.broadcast %0 : i32 to vector<128x1xi32>
    %3 = arith.addi %2, %1 : vector<128x1xi32>
    %c8_i32 = arith.constant 8 : i32
    %4 = vector.broadcast %c8_i32 : i32 to vector<128x1xi32>
    %5 = arith.cmpi slt, %3, %4 : vector<128x1xi32>
    %c0 = arith.constant 0 : index
    %c0_0 = arith.constant 0 : index
    %6 = vector.load %arg1[%c0, %c0_0] : memref<128x32xf32, #tpu.memory_space<vmem>>, vector<128x32xf32>
    %cst = arith.constant 0.000000e+00 : f32
    %7 = vector.shape_cast %5 : vector<128x1xi1> to vector<128x1xi1>
    %8 = vector.broadcast %7 : vector<128x1xi1> to vector<128x32xi1>
    %9 = vector.broadcast %cst : f32 to vector<128x32xf32>
    %10 = arith.select %8, %6, %9 : vector<128x32xi1>, vector<128x32xf32>
    %11 = arith.truncf %10 : vector<128x32xf32> to vector<128x32xbf16>
    %c0_1 = arith.constant 0 : index
    %c0_2 = arith.constant 0 : index
    %12 = vector.load %arg2[%c0_1, %c0_2] : memref<32x16xbf16, #tpu.memory_space<vmem>>, vector<32x16xbf16>
    %cst_3 = arith.constant dense<0.000000e+00> : vector<128x16xf32>
    %13 = tpu.matmul %11, %12, %cst_3 {dimension_numbers = #tpu.dot_dimension_numbers<[1], [0], [0], [1], [0, 0, 1, 1], [], []>} : vector<128x32xbf16>, vector<32x16xbf16>, vector<128x16xf32> -> vector<128x16xf32>
    %c0_4 = arith.constant 0 : index
    %c0_5 = arith.constant 0 : index
    %14 = vector.load %arg3[%c0_4, %c0_5] : memref<1x16xf32, #tpu.memory_space<vmem>>, vector<1x16xf32>
    %15 = vector.broadcast %14 : vector<1x16xf32> to vector<128x16xf32>
    %16 = arith.addf %13, %15 : vector<128x16xf32>
    %cst_6 = arith.constant 0.000000e+00 : f32
    %17 = vector.broadcast %cst_6 : f32 to vector<128x16xf32>
    %18 = arith.maximumf %16, %17 : vector<128x16xf32>
    %19 = arith.truncf %18 : vector<128x16xf32> to vector<128x16xbf16>
    %c0_7 = arith.constant 0 : index
    %c0_8 = arith.constant 0 : index
    %20 = vector.load %arg4[%c0_7, %c0_8] : memref<16x32xbf16, #tpu.memory_space<vmem>>, vector<16x32xbf16>
    %cst_9 = arith.constant dense<0.000000e+00> : vector<128x32xf32>
    %21 = tpu.matmul %19, %20, %cst_9 {dimension_numbers = #tpu.dot_dimension_numbers<[1], [0], [0], [1], [0, 0, 1, 1], [], []>} : vector<128x16xbf16>, vector<16x32xbf16>, vector<128x32xf32> -> vector<128x32xf32>
    %22 = arith.addf %10, %21 : vector<128x32xf32>
    %c0_10 = arith.constant 0 : index
    %c0_11 = arith.constant 0 : index
    %23 = vector.load %arg5[%c0_10, %c0_11] : memref<1x32xf32, #tpu.memory_space<vmem>>, vector<1x32xf32>
    %24 = vector.broadcast %23 : vector<1x32xf32> to vector<128x32xf32>
    %25 = arith.addf %22, %24 : vector<128x32xf32>
    %26 = arith.truncf %25 : vector<128x32xf32> to vector<128x32xbf16>
    %c0_12 = arith.constant 0 : index
    %c0_13 = arith.constant 0 : index
    %27 = vector.load %arg12[%c0_12, %c0_13] : memref<32x2xbf16, #tpu.memory_space<vmem>>, vector<32x2xbf16>
    %cst_14 = arith.constant dense<0.000000e+00> : vector<128x2xf32>
    %28 = tpu.matmul %26, %27, %cst_14 {dimension_numbers = #tpu.dot_dimension_numbers<[1], [0], [0], [1], [0, 0, 1, 1], [], []>} : vector<128x32xbf16>, vector<32x2xbf16>, vector<128x2xf32> -> vector<128x2xf32>
    %c0_15 = arith.constant 0 : index
    %c0_16 = arith.constant 0 : index
    %29 = vector.load %arg13[%c0_15, %c0_16] : memref<1x2xf32, #tpu.memory_space<vmem>>, vector<1x2xf32>
    %30 = vector.broadcast %29 : vector<1x2xf32> to vector<128x2xf32>
    %31 = arith.addf %28, %30 : vector<128x2xf32>
    %c0_17 = arith.constant 0 : index
    %c0_18 = arith.constant 0 : index
    %32 = vector.load %arg6[%c0_17, %c0_18] : memref<32x32xbf16, #tpu.memory_space<vmem>>, vector<32x16xbf16>
    %cst_19 = arith.constant dense<0.000000e+00> : vector<128x16xf32>
    %33 = tpu.matmul %26, %32, %cst_19 {dimension_numbers = #tpu.dot_dimension_numbers<[1], [0], [0], [1], [0, 0, 1, 1], [], []>} : vector<128x32xbf16>, vector<32x16xbf16>, vector<128x16xf32> -> vector<128x16xf32>
    %c0_20 = arith.constant 0 : index
    %c0_21 = arith.constant 0 : index
    %34 = vector.load %arg7[%c0_20, %c0_21] : memref<1x32xf32, #tpu.memory_space<vmem>>, vector<1x16xf32>
    %35 = vector.broadcast %34 : vector<1x16xf32> to vector<128x16xf32>
    %36 = arith.addf %33, %35 : vector<128x16xf32>
    %c0_22 = arith.constant 0 : index
    %c0_23 = arith.constant 0 : index
    %37 = vector.load %arg8[%c0_22, %c0_23] : memref<32x32xbf16, #tpu.memory_space<vmem>>, vector<32x16xbf16>
    %cst_24 = arith.constant dense<0.000000e+00> : vector<128x16xf32>
    %38 = tpu.matmul %26, %37, %cst_24 {dimension_numbers = #tpu.dot_dimension_numbers<[1], [0], [0], [1], [0, 0, 1, 1], [], []>} : vector<128x32xbf16>, vector<32x16xbf16>, vector<128x16xf32> -> vector<128x16xf32>
    %c0_25 = arith.constant 0 : index
    %c0_26 = arith.constant 0 : index
    %39 = vector.load %arg9[%c0_25, %c0_26] : memref<1x32xf32, #tpu.memory_space<vmem>>, vector<1x16xf32>
    %40 = vector.broadcast %39 : vector<1x16xf32> to vector<128x16xf32>
    %41 = arith.addf %38, %40 : vector<128x16xf32>
    %42 = math.tanh %36 : vector<128x16xf32>
    %43 = arith.negf %41 : vector<128x16xf32>
    %44 = math.exp %43 : vector<128x16xf32>
    %cst_27 = arith.constant 1.000000e+00 : f32
    %45 = vector.broadcast %cst_27 : f32 to vector<128x16xf32>
    %46 = arith.addf %45, %44 : vector<128x16xf32>
    %47 = arith.divf %45, %46 : vector<128x16xf32>
    %48 = arith.mulf %42, %47 : vector<128x16xf32>
    %c0_28 = arith.constant 0 : index
    %c0_29 = arith.constant 0 : index
    %49 = vector.load %arg10[%c0_28, %c0_29] : memref<1x32xf32, #tpu.memory_space<vmem>>, vector<1x16xf32>
    %50 = vector.broadcast %49 : vector<1x16xf32> to vector<128x16xf32>
    %51 = arith.mulf %48, %50 : vector<128x16xf32>
    %cst_30 = arith.constant dense<0.000000e+00> : vector<128xf32>
    %52 = vector.multi_reduction <add>, %51, %cst_30 [1] : vector<128x16xf32> to vector<128xf32>
    %53 = vector.shape_cast %52 : vector<128xf32> to vector<128x1xf32>
    %c0_31 = arith.constant 0 : index
    %c16 = arith.constant 16 : index
    %54 = vector.load %arg6[%c0_31, %c16] : memref<32x32xbf16, #tpu.memory_space<vmem>>, vector<32x16xbf16>
    %cst_32 = arith.constant dense<0.000000e+00> : vector<128x16xf32>
    %55 = tpu.matmul %26, %54, %cst_32 {dimension_numbers = #tpu.dot_dimension_numbers<[1], [0], [0], [1], [0, 0, 1, 1], [], []>} : vector<128x32xbf16>, vector<32x16xbf16>, vector<128x16xf32> -> vector<128x16xf32>
    %c0_33 = arith.constant 0 : index
    %c16_34 = arith.constant 16 : index
    %56 = vector.load %arg7[%c0_33, %c16_34] : memref<1x32xf32, #tpu.memory_space<vmem>>, vector<1x16xf32>
    %57 = vector.broadcast %56 : vector<1x16xf32> to vector<128x16xf32>
    %58 = arith.addf %55, %57 : vector<128x16xf32>
    %c0_35 = arith.constant 0 : index
    %c16_36 = arith.constant 16 : index
    %59 = vector.load %arg8[%c0_35, %c16_36] : memref<32x32xbf16, #tpu.memory_space<vmem>>, vector<32x16xbf16>
    %cst_37 = arith.constant dense<0.000000e+00> : vector<128x16xf32>
    %60 = tpu.matmul %26, %59, %cst_37 {dimension_numbers = #tpu.dot_dimension_numbers<[1], [0], [0], [1], [0, 0, 1, 1], [], []>} : vector<128x32xbf16>, vector<32x16xbf16>, vector<128x16xf32> -> vector<128x16xf32>
    %c0_38 = arith.constant 0 : index
    %c16_39 = arith.constant 16 : index
    %61 = vector.load %arg9[%c0_38, %c16_39] : memref<1x32xf32, #tpu.memory_space<vmem>>, vector<1x16xf32>
    %62 = vector.broadcast %61 : vector<1x16xf32> to vector<128x16xf32>
    %63 = arith.addf %60, %62 : vector<128x16xf32>
    %64 = math.tanh %58 : vector<128x16xf32>
    %65 = arith.negf %63 : vector<128x16xf32>
    %66 = math.exp %65 : vector<128x16xf32>
    %cst_40 = arith.constant 1.000000e+00 : f32
    %67 = vector.broadcast %cst_40 : f32 to vector<128x16xf32>
    %68 = arith.addf %67, %66 : vector<128x16xf32>
    %69 = arith.divf %67, %68 : vector<128x16xf32>
    %70 = arith.mulf %64, %69 : vector<128x16xf32>
    %c0_41 = arith.constant 0 : index
    %c16_42 = arith.constant 16 : index
    %71 = vector.load %arg10[%c0_41, %c16_42] : memref<1x32xf32, #tpu.memory_space<vmem>>, vector<1x16xf32>
    %72 = vector.broadcast %71 : vector<1x16xf32> to vector<128x16xf32>
    %73 = arith.mulf %70, %72 : vector<128x16xf32>
    %cst_43 = arith.constant dense<0.000000e+00> : vector<128xf32>
    %74 = vector.multi_reduction <add>, %73, %cst_43 [1] : vector<128x16xf32> to vector<128xf32>
    %75 = vector.shape_cast %74 : vector<128xf32> to vector<128x1xf32>
    %76 = tpu.concatenate %53, %75 in 1 : vector<128x1xf32>, vector<128x1xf32> -> vector<128x2xf32>
    %c0_44 = arith.constant 0 : index
    %c0_45 = arith.constant 0 : index
    %77 = vector.load %arg11[%c0_44, %c0_45] : memref<1x2xf32, #tpu.memory_space<vmem>>, vector<1x2xf32>
    %78 = vector.broadcast %77 : vector<1x2xf32> to vector<128x2xf32>
    %79 = arith.addf %76, %78 : vector<128x2xf32>
    %80 = math.exp %79 : vector<128x2xf32>
    %cst_46 = arith.constant 0.000000e+00 : f32
    %81 = vector.shape_cast %5 : vector<128x1xi1> to vector<128x1xi1>
    %82 = vector.broadcast %81 : vector<128x1xi1> to vector<128x2xi1>
    %83 = vector.broadcast %cst_46 : f32 to vector<128x2xf32>
    %84 = arith.select %82, %80, %83 : vector<128x2xi1>, vector<128x2xf32>
    %85 = arith.mulf %31, %84 : vector<128x2xf32>
    %cst_47 = arith.constant 0.000000e+00 : f32
    %86 = vector.shape_cast %5 : vector<128x1xi1> to vector<128x1xi1>
    %87 = vector.broadcast %86 : vector<128x1xi1> to vector<128x2xi1>
    %88 = vector.broadcast %cst_47 : f32 to vector<128x2xf32>
    %89 = arith.select %87, %85, %88 : vector<128x2xi1>, vector<128x2xf32>
    %90 = tpu.transpose %89, [1, 0] : vector<128x2xf32> -> vector<2x128xf32>
    %91 = vector.shape_cast %90 : vector<2x128xf32> to vector<1x2x128xf32>
    %c0_48 = arith.constant 0 : index
    %c0_49 = arith.constant 0 : index
    %c0_50 = arith.constant 0 : index
    %92 = vector.load %arg14[%c0_48, %c0_49, %c0_50] : memref<1x2x128xf32, #tpu.memory_space<vmem>>, vector<1x2x128xf32>
    tpu.vector_store %arg14[%c0_48, %c0_49, %c0_50], %91 {strides = array<i32>} : memref<1x2x128xf32, #tpu.memory_space<vmem>>, vector<1x2x128xf32>,
    %cst_51 = arith.constant dense<0.000000e+00> : vector<2xf32>
    %93 = vector.multi_reduction <add>, %89, %cst_51 [0] : vector<128x2xf32> to vector<2xf32>
    %94 = vector.shape_cast %93 : vector<2xf32> to vector<1x2xf32>
    %cst_52 = arith.constant dense<0.000000e+00> : vector<2xf32>
    %95 = vector.multi_reduction <add>, %84, %cst_52 [0] : vector<128x2xf32> to vector<2xf32>
    %96 = vector.shape_cast %95 : vector<2xf32> to vector<1x2xf32>
    %97 = tpu.concatenate %94, %96 in 0 : vector<1x2xf32>, vector<1x2xf32> -> vector<2x2xf32>
    %98 = vector.shape_cast %97 : vector<2x2xf32> to vector<1x2x2xf32>
    %c0_53 = arith.constant 0 : index
    %c0_54 = arith.constant 0 : index
    %c0_55 = arith.constant 0 : index
    %99 = vector.load %arg15[%c0_53, %c0_54, %c0_55] : memref<1x2x2xf32, #tpu.memory_space<vmem>>, vector<1x2x2xf32>
    tpu.vector_store %arg15[%c0_53, %c0_54, %c0_55], %98 {strides = array<i32>} : memref<1x2x2xf32, #tpu.memory_space<vmem>>, vector<1x2x2xf32>,
    return
  }
  func.func @transform_0(%arg0: i32) -> (i32, i32) {
    %c0_i32 = arith.constant 0 : i32
    %c0_i32_0 = arith.constant 0 : i32
    return %arg0, %c0_i32 : i32, i32
  }
  func.func @transform_1(%arg0: i32) -> (i32, i32) {
    %c0_i32 = arith.constant 0 : i32
    %c0_i32_0 = arith.constant 0 : i32
    %c0_i32_1 = arith.constant 0 : i32
    return %c0_i32, %c0_i32_0 : i32, i32
  }
  func.func @transform_2(%arg0: i32) -> (i32, i32) {
    %c0_i32 = arith.constant 0 : i32
    %c0_i32_0 = arith.constant 0 : i32
    %c0_i32_1 = arith.constant 0 : i32
    return %c0_i32, %c0_i32_0 : i32, i32
  }
  func.func @transform_3(%arg0: i32) -> (i32, i32) {
    %c0_i32 = arith.constant 0 : i32
    %c0_i32_0 = arith.constant 0 : i32
    %c0_i32_1 = arith.constant 0 : i32
    return %c0_i32, %c0_i32_0 : i32, i32
  }
  func.func @transform_4(%arg0: i32) -> (i32, i32) {
    %c0_i32 = arith.constant 0 : i32
    %c0_i32_0 = arith.constant 0 : i32
    %c0_i32_1 = arith.constant 0 : i32
    return %c0_i32, %c0_i32_0 : i32, i32
  }
  func.func @transform_5(%arg0: i32) -> (i32, i32) {
    %c0_i32 = arith.constant 0 : i32
    %c0_i32_0 = arith.constant 0 : i32
    %c0_i32_1 = arith.constant 0 : i32
    return %c0_i32, %c0_i32_0 : i32, i32
  }
  func.func @transform_6(%arg0: i32) -> (i32, i32) {
    %c0_i32 = arith.constant 0 : i32
    %c0_i32_0 = arith.constant 0 : i32
    %c0_i32_1 = arith.constant 0 : i32
    return %c0_i32, %c0_i32_0 : i32, i32
  }
  func.func @transform_7(%arg0: i32) -> (i32, i32) {
    %c0_i32 = arith.constant 0 : i32
    %c0_i32_0 = arith.constant 0 : i32
    %c0_i32_1 = arith.constant 0 : i32
    return %c0_i32, %c0_i32_0 : i32, i32
  }
  func.func @transform_8(%arg0: i32) -> (i32, i32) {
    %c0_i32 = arith.constant 0 : i32
    %c0_i32_0 = arith.constant 0 : i32
    %c0_i32_1 = arith.constant 0 : i32
    return %c0_i32, %c0_i32_0 : i32, i32
  }
  func.func @transform_9(%arg0: i32) -> (i32, i32) {
    %c0_i32 = arith.constant 0 : i32
    %c0_i32_0 = arith.constant 0 : i32
    %c0_i32_1 = arith.constant 0 : i32
    return %c0_i32, %c0_i32_0 : i32, i32
  }
  func.func @transform_10(%arg0: i32) -> (i32, i32) {
    %c0_i32 = arith.constant 0 : i32
    %c0_i32_0 = arith.constant 0 : i32
    %c0_i32_1 = arith.constant 0 : i32
    return %c0_i32, %c0_i32_0 : i32, i32
  }
  func.func @transform_11(%arg0: i32) -> (i32, i32) {
    %c0_i32 = arith.constant 0 : i32
    %c0_i32_0 = arith.constant 0 : i32
    %c0_i32_1 = arith.constant 0 : i32
    return %c0_i32, %c0_i32_0 : i32, i32
  }
  func.func @transform_12(%arg0: i32) -> (i32, i32) {
    %c0_i32 = arith.constant 0 : i32
    %c0_i32_0 = arith.constant 0 : i32
    %c0_i32_1 = arith.constant 0 : i32
    return %c0_i32, %c0_i32_0 : i32, i32
  }
  func.func @transform_13(%arg0: i32) -> (i32, i32, i32) {
    %c0_i32 = arith.constant 0 : i32
    %c0_i32_0 = arith.constant 0 : i32
    %c0_i32_1 = arith.constant 0 : i32
    return %c0_i32, %c0_i32_0, %arg0 : i32, i32, i32
  }
  func.func @transform_14(%arg0: i32) -> (i32, i32, i32) {
    %c0_i32 = arith.constant 0 : i32
    %c0_i32_0 = arith.constant 0 : i32
    %c0_i32_1 = arith.constant 0 : i32
    return %arg0, %c0_i32, %c0_i32_0 : i32, i32, i32
  }
}

</mosaic_0001>

<llo_original>
// kernel: tpu_custom_call.1
$region0: #{tpu_custom_call.1}
  #allocation0 [shape = 'u32[]', space=smem, size = 0x4, offset = 0x4, fixed_abs, tag = 'smem constant byte address 0x4 - core index']
  #allocation1 [shape = 'u32[144,128]{1,0:T(1,128)}', space=vmem, size = 0x12000, scoped, tag = 'internal scratch']
  %s0 = inlined_call_operand.vmem [shape: f32[8,32], index: 0, kind: input, shape index: {}]
  %s1 = inlined_call_operand.vmem [shape: bf16[32,16], index: 1, kind: input, shape index: {}]
  %s2 = inlined_call_operand.hbm [shape: f32[1,16], index: 2, kind: input, shape index: {}]
  %s3 = inlined_call_operand.vmem [shape: bf16[16,32], index: 3, kind: input, shape index: {}]
  %s4 = inlined_call_operand.vmem [shape: f32[1,32], index: 4, kind: input, shape index: {}]
  %s5 = inlined_call_operand.vmem [shape: bf16[32,32], index: 5, kind: input, shape index: {}]
  %s6 = inlined_call_operand.vmem [shape: f32[1,32], index: 6, kind: input, shape index: {}]
  %s7 = inlined_call_operand.vmem [shape: bf16[32,32], index: 7, kind: input, shape index: {}]
  %s8 = inlined_call_operand.vmem [shape: f32[1,32], index: 8, kind: input, shape index: {}]
  %s9 = inlined_call_operand.vmem [shape: f32[1,32], index: 9, kind: input, shape index: {}]
  %s10 = inlined_call_operand.vmem [shape: f32[1,2], index: 10, kind: input, shape index: {}]
  %s11 = inlined_call_operand.vmem [shape: bf16[32,2], index: 11, kind: input, shape index: {}]
  %s12 = inlined_call_operand.vmem [shape: f32[1,2], index: 12, kind: input, shape index: {}]
  %s13 = inlined_call_operand.hbm [shape: f32[1,2,8], index: 13, kind: output, shape index: {0}]
  %s14 = inlined_call_operand.hbm [shape: f32[1,2,2], index: 14, kind: output, shape index: {1}]
  %15 = xla_tuple %s13, %s14
  %s16 = sld [smem:[#allocation0]]
  $region74: #{tpu_custom_call.1} parent=0
    _
  %s18 = ssub.s32 1, %s16
  %s19 = scalar_select 0, %s18, %s16
  $region1: #{tpu_custom_call.1} parent=0
    #allocation2 [shape = 'u8[512]{0}', space=vmem, size = 0x400, scoped, tag = 'input window, operand 2, single buffered']
    #allocation3 [shape = 's32[1]{0}', space=sflag, size = 0x4, scoped, tag = 'scoped memory for tpu_custom_call.1']
    #allocation4 [shape = 's32[1]{0}', space=sflag, size = 0x4, scoped, tag = 'scoped memory for tpu_custom_call.1']
    #allocation5 [shape = 'u8[1024]{0}', space=vmem, size = 0x400, scoped, tag = 'output window, operand 0, single buffered']
    #allocation6 [shape = 'u8[1024]{0}', space=vmem, size = 0x400, scoped, tag = 'output window, operand 1, single buffered']
    #allocation7 [shape = 's32[1]{0}', space=sflag, size = 0x4, scoped, tag = 'scoped memory for tpu_custom_call.1']
    %20 = vsyncpa [#allocation3], 0
    %21 = vsyncpa [#allocation4], 0
    %22 = vsyncpa [#allocation7], 0
    // Predicated region
    $region2: #{tpu_custom_call.1} parent=1 // pred_check
      _
    $region3: #{tpu_custom_call.1} parent=1 // pred_check_branch
      %24 = sbr.rel (0) target = $region5
    $region4: #{tpu_custom_call.1} parent=1 // pred_region
      _
    $region5: #{tpu_custom_call.1} parent=1 // pred_fallthru
      _
    // Predicated region
    $region6: #{tpu_custom_call.1} parent=1 // pred_check
      _
    $region7: #{tpu_custom_call.1} parent=1 // pred_check_branch
      %26 = sbr.rel (0) target = $region9
    $region8: #{tpu_custom_call.1} parent=1 // pred_region
      _
    $region9: #{tpu_custom_call.1} parent=1 // pred_fallthru
      _
    // Predicated region
    $region10: #{tpu_custom_call.1} parent=1 // pred_check
      _
    $region11: #{tpu_custom_call.1} parent=1 // pred_check_branch
      %28 = sbr.rel (0) target = $region13
    $region12: #{tpu_custom_call.1} parent=1 // pred_region
      %s30 = ssub.s32 16, 16
      %31 = vsyncadd [#allocation3], %s30
      %s33 = sshll.u32 [#allocation2], 4
      %s34 = int_to_ptr.vmem [resolvable:$true] %s33
      %36 = dma.hbm_to_vmem [thread:$0]  %s2, 16, %s34, [#allocation3]
    $region13: #{tpu_custom_call.1} parent=1 // pred_fallthru
      _
    // Predicated region
    $region14: #{tpu_custom_call.1} parent=1 // pred_check
      _
    $region15: #{tpu_custom_call.1} parent=1 // pred_check_branch
      %38 = sbr.rel (0) target = $region17
    $region16: #{tpu_custom_call.1} parent=1 // pred_region
      _
    $region17: #{tpu_custom_call.1} parent=1 // pred_fallthru
      _
    // Predicated region
    $region18: #{tpu_custom_call.1} parent=1 // pred_check
      _
    $region19: #{tpu_custom_call.1} parent=1 // pred_check_branch
      %40 = sbr.rel (0) target = $region21
    $region20: #{tpu_custom_call.1} parent=1 // pred_region
      _
    $region21: #{tpu_custom_call.1} parent=1 // pred_fallthru
      _
    // Predicated region
    $region22: #{tpu_custom_call.1} parent=1 // pred_check
      _
    $region23: #{tpu_custom_call.1} parent=1 // pred_check_branch
      %42 = sbr.rel (0) target = $region25
    $region24: #{tpu_custom_call.1} parent=1 // pred_region
      _
    $region25: #{tpu_custom_call.1} parent=1 // pred_fallthru
      _
    // Predicated region
    $region26: #{tpu_custom_call.1} parent=1 // pred_check
      _
    $region27: #{tpu_custom_call.1} parent=1 // pred_check_branch
      %44 = sbr.rel (0) target = $region29
    $region28: #{tpu_custom_call.1} parent=1 // pred_region
      _
    $region29: #{tpu_custom_call.1} parent=1 // pred_fallthru
      _
    // Predicated region
    $region30: #{tpu_custom_call.1} parent=1 // pred_check
      _
    $region31: #{tpu_custom_call.1} parent=1 // pred_check_branch
      %46 = sbr.rel (0) target = $region33
    $region32: #{tpu_custom_call.1} parent=1 // pred_region
      _
    $region33: #{tpu_custom_call.1} parent=1 // pred_fallthru
      _
    // Predicated region
    $region34: #{tpu_custom_call.1} parent=1 // pred_check
      _
    $region35: #{tpu_custom_call.1} parent=1 // pred_check_branch
      %48 = sbr.rel (0) target = $region37
    $region36: #{tpu_custom_call.1} parent=1 // pred_region
      _
    $region37: #{tpu_custom_call.1} parent=1 // pred_fallthru
      _
    // Predicated region
    $region38: #{tpu_custom_call.1} parent=1 // pred_check
      _
    $region39: #{tpu_custom_call.1} parent=1 // pred_check_branch
      %50 = sbr.rel (0) target = $region41
    $region40: #{tpu_custom_call.1} parent=1 // pred_region
      _
    $region41: #{tpu_custom_call.1} parent=1 // pred_fallthru
      _
    // Predicated region
    $region42: #{tpu_custom_call.1} parent=1 // pred_check
      _
    $region43: #{tpu_custom_call.1} parent=1 // pred_check_branch
      %52 = sbr.rel (0) target = $region45
    $region44: #{tpu_custom_call.1} parent=1 // pred_region
      _
    $region45: #{tpu_custom_call.1} parent=1 // pred_fallthru
      _
    // Predicated region
    $region46: #{tpu_custom_call.1} parent=1 // pred_check
      _
    $region47: #{tpu_custom_call.1} parent=1 // pred_check_branch
      %54 = sbr.rel (0) target = $region49
    $region48: #{tpu_custom_call.1} parent=1 // pred_region
      _
    $region49: #{tpu_custom_call.1} parent=1 // pred_fallthru
      _
    // Predicated region
    $region50: #{tpu_custom_call.1} parent=1 // pred_check
      _
    $region51: #{tpu_custom_call.1} parent=1 // pred_check_branch
      %56 = sbr.rel (0) target = $region53
    $region52: #{tpu_custom_call.1} parent=1 // pred_region
      _
    $region53: #{tpu_custom_call.1} parent=1 // pred_fallthru
      _
    // Predicated region
    $region54: #{tpu_custom_call.1} parent=1 // pred_check
      _
    $region55: #{tpu_custom_call.1} parent=1 // pred_check_branch
      %58 = sbr.rel (0) target = $region57
    $region56: #{tpu_custom_call.1} parent=1 // pred_region
      %59 = dma.done [#allocation3], 16
    $region57: #{tpu_custom_call.1} parent=1 // pred_fallthru
      _
    %s61 = smul.u32 0, 128
    %v62 = vlaneseq
    %v63 = vshrl.u32 %v62, 7
    %v64 = vadd.s32 %v63, 8
    %v65 = vadd.s32 %v63, 16
    %v66 = vadd.s32 %v63, 24
    %v67 = vadd.s32 %v63, 32
    %v68 = vadd.s32 %v63, 40
    %v69 = vadd.s32 %v63, 48
    %v70 = vadd.s32 %v63, 56
    %v71 = vadd.s32 %v63, 64
    %v72 = vadd.s32 %v63, 72
    %v73 = vadd.s32 %v63, 80
    %v74 = vadd.s32 %v63, 88
    %v75 = vadd.s32 %v63, 96
    %v76 = vadd.s32 %v63, 104
    %v77 = vadd.s32 %v63, 112
    %v78 = vadd.s32 %v63, 120
    %v79 = vstv %s61
    %v80 = vadd.s32 %v79, %v63
    %v81 = vadd.s32 %v79, %v64
    %v82 = vadd.s32 %v79, %v65
    %v83 = vadd.s32 %v79, %v66
    %v84 = vadd.s32 %v79, %v67
    %v85 = vadd.s32 %v79, %v68
    %v86 = vadd.s32 %v79, %v69
    %v87 = vadd.s32 %v79, %v70
    %v88 = vadd.s32 %v79, %v71
    %v89 = vadd.s32 %v79, %v72
    %v90 = vadd.s32 %v79, %v73
    %v91 = vadd.s32 %v79, %v74
    %v92 = vadd.s32 %v79, %v75
    %v93 = vadd.s32 %v79, %v76
    %v94 = vadd.s32 %v79, %v77
    %v95 = vadd.s32 %v79, %v78
    %vm96 = vcmp.lt.s32.totalorder %v80, 8
    %vm97 = vcmp.lt.s32.totalorder %v81, 8
    %vm98 = vcmp.lt.s32.totalorder %v82, 8
    %vm99 = vcmp.lt.s32.totalorder %v83, 8
    %vm100 = vcmp.lt.s32.totalorder %v84, 8
    %vm101 = vcmp.lt.s32.totalorder %v85, 8
    %vm102 = vcmp.lt.s32.totalorder %v86, 8
    %vm103 = vcmp.lt.s32.totalorder %v87, 8
    %vm104 = vcmp.lt.s32.totalorder %v88, 8
    %vm105 = vcmp.lt.s32.totalorder %v89, 8
    %vm106 = vcmp.lt.s32.totalorder %v90, 8
    %vm107 = vcmp.lt.s32.totalorder %v91, 8
    %vm108 = vcmp.lt.s32.totalorder %v92, 8
    %vm109 = vcmp.lt.s32.totalorder %v93, 8
    %vm110 = vcmp.lt.s32.totalorder %v94, 8
    %vm111 = vcmp.lt.s32.totalorder %v95, 8
    %v112 = vld [vmem:[%s0] sm:$0xff]
    %v113 = vld [vmem:[%s0 + $0x8] sm:$0xff]
    %v114 = vld [vmem:[%s0 + $0x10] sm:$0xff]
    %v115 = vld [vmem:[%s0 + $0x18] sm:$0xff]
    %v116 = vld [vmem:[%s0 + $0x20] sm:$0xff]
    %v117 = vld [vmem:[%s0 + $0x28] sm:$0xff]
    %v118 = vld [vmem:[%s0 + $0x30] sm:$0xff]
    %v119 = vld [vmem:[%s0 + $0x38] sm:$0xff]
    %v120 = vld [vmem:[%s0 + $0x40] sm:$0xff]
    %v121 = vld [vmem:[%s0 + $0x48] sm:$0xff]
    %v122 = vld [vmem:[%s0 + $0x50] sm:$0xff]
    %v123 = vld [vmem:[%s0 + $0x58] sm:$0xff]
    %v124 = vld [vmem:[%s0 + $0x60] sm:$0xff]
    %v125 = vld [vmem:[%s0 + $0x68] sm:$0xff]
    %v126 = vld [vmem:[%s0 + $0x70] sm:$0xff]
    %v127 = vld [vmem:[%s0 + $0x78] sm:$0xff]
    %v128 = vsel %vm96, 1, 0
    %v129 = vsel %vm97, 1, 0
    %v130 = vsel %vm98, 1, 0
    %v131 = vsel %vm99, 1, 0
    %v132 = vsel %vm100, 1, 0
    %v133 = vsel %vm101, 1, 0
    %v134 = vsel %vm102, 1, 0
    %v135 = vsel %vm103, 1, 0
    %v136 = vsel %vm104, 1, 0
    %v137 = vsel %vm105, 1, 0
    %v138 = vsel %vm106, 1, 0
    %v139 = vsel %vm107, 1, 0
    %v140 = vsel %vm108, 1, 0
    %v141 = vsel %vm109, 1, 0
    %v142 = vsel %vm110, 1, 0
    %v143 = vsel %vm111, 1, 0
    %vm144 = vcmp.eq.s32.totalorder %v128, 1
    %vm145 = vcmp.eq.s32.totalorder %v129, 1
    %vm146 = vcmp.eq.s32.totalorder %v130, 1
    %vm147 = vcmp.eq.s32.totalorder %v131, 1
    %vm148 = vcmp.eq.s32.totalorder %v132, 1
    %vm149 = vcmp.eq.s32.totalorder %v133, 1
    %vm150 = vcmp.eq.s32.totalorder %v134, 1
    %vm151 = vcmp.eq.s32.totalorder %v135, 1
    %vm152 = vcmp.eq.s32.totalorder %v136, 1
    %vm153 = vcmp.eq.s32.totalorder %v137, 1
    %vm154 = vcmp.eq.s32.totalorder %v138, 1
    %vm155 = vcmp.eq.s32.totalorder %v139, 1
    %vm156 = vcmp.eq.s32.totalorder %v140, 1
    %vm157 = vcmp.eq.s32.totalorder %v141, 1
    %vm158 = vcmp.eq.s32.totalorder %v142, 1
    %vm159 = vcmp.eq.s32.totalorder %v143, 1
    %v160 = vsel %vm144, %v112, 0.0
    %v161 = vsel %vm145, %v113, 0.0
    %v162 = vsel %vm146, %v114, 0.0
    %v163 = vsel %vm147, %v115, 0.0
    %v164 = vsel %vm148, %v116, 0.0
    %v165 = vsel %vm149, %v117, 0.0
    %v166 = vsel %vm150, %v118, 0.0
    %v167 = vsel %vm151, %v119, 0.0
    %v168 = vsel %vm152, %v120, 0.0
    %v169 = vsel %vm153, %v121, 0.0
    %v170 = vsel %vm154, %v122, 0.0
    %v171 = vsel %vm155, %v123, 0.0
    %v172 = vsel %vm156, %v124, 0.0
    %v173 = vsel %vm157, %v125, 0.0
    %v174 = vsel %vm158, %v126, 0.0
    %v175 = vsel %vm159, %v127, 0.0
    %v176 = vpack.c.bf16 %v161, %v160
    %v177 = vpack.c.bf16 %v163, %v162
    %v178 = vpack.c.bf16 %v165, %v164
    %v179 = vpack.c.bf16 %v167, %v166
    %v180 = vpack.c.bf16 %v169, %v168
    %v181 = vpack.c.bf16 %v171, %v170
    %v182 = vpack.c.bf16 %v173, %v172
    %v183 = vpack.c.bf16 %v175, %v174
    %v184 = vld [vmem:[%s1] sm:$0xf]
    %v185 = vld [vmem:[%s1 + $0x4] sm:$0xf]
    %v186 = vld [vmem:[%s1 + $0x8] sm:$0xf]
    %v187 = vld [vmem:[%s1 + $0xc] sm:$0xf]
    %v188 = vld [vmem:[#allocation2] sm:$0x1]
    %v190 = vlaneseq
    %v191 = vshrl.u32 %v190, 7
    %v192 = vsub.s32 0, %v191
    %v193 = vrot.slane %v188, %v192
    %v199 = vunpack.c.l.b16 %v184
    %v200 = vunpack.c.l.b16 %v185
    %v201 = vunpack.c.l.b16 %v186
    %v202 = vunpack.c.l.b16 %v187
    %v203 = vpack.c.b16 %v200, %v199
    %v204 = vpack.c.b16 %v202, %v201
    %vm207 = vcmask 261120
    %v209 = vsel %vm207, %v176, 0
    %v212 = vsel %vm207, %v177, 0
    %v215 = vsel %vm207, %v178, 0
    %v218 = vsel %vm207, %v179, 0
    %v221 = vsel %vm207, %v180, 0
    %v224 = vsel %vm207, %v181, 0
    %v227 = vsel %vm207, %v182, 0
    %v230 = vsel %vm207, %v183, 0
    %232 = vmatprep.subr.bf16.mxu0 0
    %233 = vmatpush1.bf16.msra.mxu0 %v203
    %234 = vmatprep.subr.bf16.mxu0 0
    %235 = vmatpush1.bf16.msra.mxu0 %v204
    %236 = vmatprep.subr.bf16.mxu0 0
    %237 = vmatpush1.bf16.msra.mxu0 0
    %238 = vmatprep.subr.bf16.mxu0 0
    %239 = vmatpush1.bf16.msra.mxu0 0
    %240 = vmatprep.subr.bf16.mxu0 0
    %241 = vmatpush1.bf16.msra.mxu0 0
    %242 = vmatprep.subr.bf16.mxu0 0
    %243 = vmatpush1.bf16.msra.mxu0 0
    %244 = vmatprep.subr.bf16.mxu0 0
    %245 = vmatpush1.bf16.msra.mxu0 0
    %246 = vmatprep.subr.bf16.mxu0 0
    %247 = vmatpush1.bf16.msra.mxu0 0
    %248 = vmatprep.subr.bf16.mxu0 0
    %249 = vmatpush1.bf16.msra.mxu0 0
    %250 = vmatprep.subr.bf16.mxu0 0
    %251 = vmatpush1.bf16.msra.mxu0 0
    %252 = vmatprep.subr.bf16.mxu0 0
    %253 = vmatpush1.bf16.msra.mxu0 0
    %254 = vmatprep.subr.bf16.mxu0 0
    %255 = vmatpush1.bf16.msra.mxu0 0
    %256 = vmatprep.subr.bf16.mxu0 0
    %257 = vmatpush1.bf16.msra.mxu0 0
    %258 = vmatprep.subr.bf16.mxu0 0
    %259 = vmatpush1.bf16.msra.mxu0 0
    %260 = vmatprep.subr.bf16.mxu0 0
    %261 = vmatpush1.bf16.msra.mxu0 0
    %262 = vmatprep.subr.bf16.mxu0 0
    %263 = vmatpush1.bf16.msra.mxu0 0
    %264 = vmatprep.mubr.bf16.mxu0 0
    %265 = vmatmul.mubr.bf16.gmra.mrb[0].mxu0 %v209
    %v266 = vpop.f32.mrb[0].mxu0
    %v267 = vadd.f32 %v193, %v266
    %v268 = vpop.f32.mrb[0].mxu0
    %v269 = vpop.f32.mrb[0].mxu0
    %v270 = vadd.f32 %v193, %v269
    %v271 = vpop.f32.mrb[0].mxu0
    %272 = vmatprep.mubr.bf16.mxu0 0
    %273 = vmatmul.mubr.bf16.gmra.mrb[0].mxu0 %v212
    %v274 = vpop.f32.mrb[0].mxu0
    %v275 = vadd.f32 %v193, %v274
    %v276 = vpop.f32.mrb[0].mxu0
    %v277 = vpop.f32.mrb[0].mxu0
    %v278 = vadd.f32 %v193, %v277
    %v279 = vpop.f32.mrb[0].mxu0
    %280 = vmatprep.mubr.bf16.mxu0 0
    %281 = vmatmul.mubr.bf16.gmra.mrb[0].mxu0 %v215
    %v282 = vpop.f32.mrb[0].mxu0
    %v283 = vadd.f32 %v193, %v282
    %v284 = vpop.f32.mrb[0].mxu0
    %v285 = vpop.f32.mrb[0].mxu0
    %v286 = vadd.f32 %v193, %v285
    %v287 = vpop.f32.mrb[0].mxu0
    %288 = vmatprep.mubr.bf16.mxu0 0
    %289 = vmatmul.mubr.bf16.gmra.mrb[0].mxu0 %v218
    %v290 = vpop.f32.mrb[0].mxu0
    %v291 = vadd.f32 %v193, %v290
    %v292 = vpop.f32.mrb[0].mxu0
    %v293 = vpop.f32.mrb[0].mxu0
    %v294 = vadd.f32 %v193, %v293
    %v295 = vpop.f32.mrb[0].mxu0
    %296 = vmatprep.mubr.bf16.mxu0 0
    %297 = vmatmul.mubr.bf16.gmra.mrb[0].mxu0 %v221
    %v298 = vpop.f32.mrb[0].mxu0
    %v299 = vadd.f32 %v193, %v298
    %v300 = vpop.f32.mrb[0].mxu0
    %v301 = vpop.f32.mrb[0].mxu0
    %v302 = vadd.f32 %v193, %v301
    %v303 = vpop.f32.mrb[0].mxu0
    %304 = vmatprep.mubr.bf16.mxu0 0
    %305 = vmatmul.mubr.bf16.gmra.mrb[0].mxu0 %v224
    %v306 = vpop.f32.mrb[0].mxu0
    %v307 = vadd.f32 %v193, %v306
    %v308 = vpop.f32.mrb[0].mxu0
    %v309 = vpop.f32.mrb[0].mxu0
    %v310 = vadd.f32 %v193, %v309
    %v311 = vpop.f32.mrb[0].mxu0
    %312 = vmatprep.mubr.bf16.mxu0 0
    %313 = vmatmul.mubr.bf16.gmra.mrb[0].mxu0 %v227
    %v314 = vpop.f32.mrb[0].mxu0
    %v315 = vadd.f32 %v193, %v314
    %v316 = vpop.f32.mrb[0].mxu0
    %v317 = vpop.f32.mrb[0].mxu0
    %v318 = vadd.f32 %v193, %v317
    %v319 = vpop.f32.mrb[0].mxu0
    %320 = vmatprep.mubr.bf16.mxu0 0
    %321 = vmatmul.mubr.bf16.gmra.mrb[0].mxu0 %v230
    %v322 = vpop.f32.mrb[0].mxu0
    %v323 = vadd.f32 %v193, %v322
    %v324 = vpop.f32.mrb[0].mxu0
    %v325 = vpop.f32.mrb[0].mxu0
    %v326 = vadd.f32 %v193, %v325
    %v327 = vpop.f32.mrb[0].mxu0
    %328 = vdwg.mxu0
    %v329 = vmax.f32 %v267, 0.0
    %v330 = vmax.f32 %v270, 0.0
    %v331 = vmax.f32 %v275, 0.0
    %v332 = vmax.f32 %v278, 0.0
    %v333 = vmax.f32 %v283, 0.0
    %v334 = vmax.f32 %v286, 0.0
    %v335 = vmax.f32 %v291, 0.0
    %v336 = vmax.f32 %v294, 0.0
    %v337 = vmax.f32 %v299, 0.0
    %v338 = vmax.f32 %v302, 0.0
    %v339 = vmax.f32 %v307, 0.0
    %v340 = vmax.f32 %v310, 0.0
    %v341 = vmax.f32 %v315, 0.0
    %v342 = vmax.f32 %v318, 0.0
    %v343 = vmax.f32 %v323, 0.0
    %v344 = vmax.f32 %v326, 0.0
    %v345 = vpack.c.bf16 %v330, %v329
    %v346 = vpack.c.bf16 %v332, %v331
    %v347 = vpack.c.bf16 %v334, %v333
    %v348 = vpack.c.bf16 %v336, %v335
    %v349 = vpack.c.bf16 %v338, %v337
    %v350 = vpack.c.bf16 %v340, %v339
    %v351 = vpack.c.bf16 %v342, %v341
    %v352 = vpack.c.bf16 %v344, %v343
    %v353 = vld [vmem:[%s3] sm:$0xf]
    %v354 = vld [vmem:[%s3 + $0x4] sm:$0xf]
    %v357 = vunpack.c.l.b16 %v353
    %v358 = vunpack.c.l.b16 %v354
    %v359 = vpack.c.b16 %v358, %v357
    %vm361 = vcmask 130048
    %v363 = vsel %vm361, %v345, 0
    %v366 = vsel %vm361, %v346, 0
    %v369 = vsel %vm361, %v347, 0
    %v372 = vsel %vm361, %v348, 0
    %v375 = vsel %vm361, %v349, 0
    %v378 = vsel %vm361, %v350, 0
    %v381 = vsel %vm361, %v351, 0
    %v384 = vsel %vm361, %v352, 0
    %386 = vmatprep.subr.bf16.mxu0 0
    %387 = vmatpush1.bf16.msra.mxu0 %v359
    %388 = vmatprep.subr.bf16.mxu0 0
    %389 = vmatpush1.bf16.msra.mxu0 0
    %390 = vmatprep.subr.bf16.mxu0 0
    %391 = vmatpush1.bf16.msra.mxu0 0
    %392 = vmatprep.subr.bf16.mxu0 0
    %393 = vmatpush1.bf16.msra.mxu0 0
    %394 = vmatprep.subr.bf16.mxu0 0
    %395 = vmatpush1.bf16.msra.mxu0 0
    %396 = vmatprep.subr.bf16.mxu0 0
    %397 = vmatpush1.bf16.msra.mxu0 0
    %398 = vmatprep.subr.bf16.mxu0 0
    %399 = vmatpush1.bf16.msra.mxu0 0
    %400 = vmatprep.subr.bf16.mxu0 0
    %401 = vmatpush1.bf16.msra.mxu0 0
    %402 = vmatprep.subr.bf16.mxu0 0
    %403 = vmatpush1.bf16.msra.mxu0 0
    %404 = vmatprep.subr.bf16.mxu0 0
    %405 = vmatpush1.bf16.msra.mxu0 0
    %406 = vmatprep.subr.bf16.mxu0 0
    %407 = vmatpush1.bf16.msra.mxu0 0
    %408 = vmatprep.subr.bf16.mxu0 0
    %409 = vmatpush1.bf16.msra.mxu0 0
    %410 = vmatprep.subr.bf16.mxu0 0
    %411 = vmatpush1.bf16.msra.mxu0 0
    %412 = vmatprep.subr.bf16.mxu0 0
    %413 = vmatpush1.bf16.msra.mxu0 0
    %414 = vmatprep.subr.bf16.mxu0 0
    %415 = vmatpush1.bf16.msra.mxu0 0
    %416 = vmatprep.subr.bf16.mxu0 0
    %417 = vmatpush1.bf16.msra.mxu0 0
    %418 = vmatprep.mubr.bf16.mxu0 0
    %419 = vmatmul.mubr.bf16.gmra.mrb[0].mxu0 %v363
    %v420 = vpop.f32.mrb[0].mxu0
    %v421 = vadd.f32 0.0, %v420
    %v422 = vpop.f32.mrb[0].mxu0
    %v423 = vpop.f32.mrb[0].mxu0
    %v424 = vadd.f32 0.0, %v423
    %v425 = vpop.f32.mrb[0].mxu0
    %426 = vmatprep.mubr.bf16.mxu0 0
    %427 = vmatmul.mubr.bf16.gmra.mrb[0].mxu0 %v366
    %v428 = vpop.f32.mrb[0].mxu0
    %v429 = vadd.f32 0.0, %v428
    %v430 = vpop.f32.mrb[0].mxu0
    %v431 = vpop.f32.mrb[0].mxu0
    %v432 = vadd.f32 0.0, %v431
    %v433 = vpop.f32.mrb[0].mxu0
    %434 = vmatprep.mubr.bf16.mxu0 0
    %435 = vmatmul.mubr.bf16.gmra.mrb[0].mxu0 %v369
    %v436 = vpop.f32.mrb[0].mxu0
    %v437 = vadd.f32 0.0, %v436
    %v438 = vpop.f32.mrb[0].mxu0
    %v439 = vpop.f32.mrb[0].mxu0
    %v440 = vadd.f32 0.0, %v439
    %v441 = vpop.f32.mrb[0].mxu0
    %442 = vmatprep.mubr.bf16.mxu0 0
    %443 = vmatmul.mubr.bf16.gmra.mrb[0].mxu0 %v372
    %v444 = vpop.f32.mrb[0].mxu0
    %v445 = vadd.f32 0.0, %v444
    %v446 = vpop.f32.mrb[0].mxu0
    %v447 = vpop.f32.mrb[0].mxu0
    %v448 = vadd.f32 0.0, %v447
    %v449 = vpop.f32.mrb[0].mxu0
    %450 = vmatprep.mubr.bf16.mxu0 0
    %451 = vmatmul.mubr.bf16.gmra.mrb[0].mxu0 %v375
    %v452 = vpop.f32.mrb[0].mxu0
    %v453 = vadd.f32 0.0, %v452
    %v454 = vpop.f32.mrb[0].mxu0
    %v455 = vpop.f32.mrb[0].mxu0
    %v456 = vadd.f32 0.0, %v455
    %v457 = vpop.f32.mrb[0].mxu0
    %458 = vmatprep.mubr.bf16.mxu0 0
    %459 = vmatmul.mubr.bf16.gmra.mrb[0].mxu0 %v378
    %v460 = vpop.f32.mrb[0].mxu0
    %v461 = vadd.f32 0.0, %v460
    %v462 = vpop.f32.mrb[0].mxu0
    %v463 = vpop.f32.mrb[0].mxu0
    %v464 = vadd.f32 0.0, %v463
    %v465 = vpop.f32.mrb[0].mxu0
    %466 = vmatprep.mubr.bf16.mxu0 0
    %467 = vmatmul.mubr.bf16.gmra.mrb[0].mxu0 %v381
    %v468 = vpop.f32.mrb[0].mxu0
    %v469 = vadd.f32 0.0, %v468
    %v470 = vpop.f32.mrb[0].mxu0
    %v471 = vpop.f32.mrb[0].mxu0
    %v472 = vadd.f32 0.0, %v471
    %v473 = vpop.f32.mrb[0].mxu0
    %474 = vmatprep.mubr.bf16.mxu0 0
    %475 = vmatmul.mubr.bf16.gmra.mrb[0].mxu0 %v384
    %v476 = vpop.f32.mrb[0].mxu0
    %v477 = vadd.f32 0.0, %v476
    %v478 = vpop.f32.mrb[0].mxu0
    %v479 = vpop.f32.mrb[0].mxu0
    %v480 = vadd.f32 0.0, %v479
    %v481 = vpop.f32.mrb[0].mxu0
    %482 = vdwg.mxu0
    %v483 = vadd.f32 %v160, %v421
    %v484 = vadd.f32 %v161, %v424
    %v485 = vadd.f32 %v162, %v429
    %v486 = vadd.f32 %v163, %v432
    %v487 = vadd.f32 %v164, %v437
    %v488 = vadd.f32 %v165, %v440
    %v489 = vadd.f32 %v166, %v445
    %v490 = vadd.f32 %v167, %v448
    %v491 = vadd.f32 %v168, %v453
    %v492 = vadd.f32 %v169, %v456
    %v493 = vadd.f32 %v170, %v461
    %v494 = vadd.f32 %v171, %v464
    %v495 = vadd.f32 %v172, %v469
    %v496 = vadd.f32 %v173, %v472
    %v497 = vadd.f32 %v174, %v477
    %v498 = vadd.f32 %v175, %v480
    %v499 = vld [vmem:[%s4] sm:$0x1]
    %v501 = vlaneseq
    %v502 = vshrl.u32 %v501, 7
    %v503 = vsub.s32 0, %v502
    %v504 = vrot.slane %v499, %v503
    %v506 = vadd.f32 %v483, %v504
    %v507 = vadd.f32 %v484, %v504
    %v508 = vadd.f32 %v485, %v504
    %v509 = vadd.f32 %v486, %v504
    %v510 = vadd.f32 %v487, %v504
    %v511 = vadd.f32 %v488, %v504
    %v512 = vadd.f32 %v489, %v504
    %v513 = vadd.f32 %v490, %v504
    %v514 = vadd.f32 %v491, %v504
    %v515 = vadd.f32 %v492, %v504
    %v516 = vadd.f32 %v493, %v504
    %v517 = vadd.f32 %v494, %v504
    %v518 = vadd.f32 %v495, %v504
    %v519 = vadd.f32 %v496, %v504
    %v520 = vadd.f32 %v497, %v504
    %v521 = vadd.f32 %v498, %v504
    %v522 = vpack.c.bf16 %v507, %v506
    %v523 = vpack.c.bf16 %v509, %v508
    %v524 = vpack.c.bf16 %v511, %v510
    %v525 = vpack.c.bf16 %v513, %v512
    %v526 = vpack.c.bf16 %v515, %v514
    %v527 = vpack.c.bf16 %v517, %v516
    %v528 = vpack.c.bf16 %v519, %v518
    %v529 = vpack.c.bf16 %v521, %v520
    %v530 = vld [vmem:[%s11] sm:$0xf]
    %v531 = vld [vmem:[%s11 + $0x4] sm:$0xf]
    %v532 = vld [vmem:[%s11 + $0x8] sm:$0xf]
    %v533 = vld [vmem:[%s11 + $0xc] sm:$0xf]
    %v534 = vld [vmem:[%s12] sm:$0x1]
    %v536 = vlaneseq
    %v537 = vshrl.u32 %v536, 7
    %v538 = vsub.s32 0, %v537
    %v539 = vrot.slane %v534, %v538
    %v545 = vunpack.c.l.b16 %v530
    %v546 = vunpack.c.l.b16 %v531
    %v547 = vunpack.c.l.b16 %v532
    %v548 = vunpack.c.l.b16 %v533
    %v549 = vpack.c.b16 %v546, %v545
    %v550 = vpack.c.b16 %v548, %v547
    %v554 = vsel %vm207, %v522, 0
    %v557 = vsel %vm207, %v523, 0
    %v560 = vsel %vm207, %v524, 0
    %v563 = vsel %vm207, %v525, 0
    %v566 = vsel %vm207, %v526, 0
    %v569 = vsel %vm207, %v527, 0
    %v572 = vsel %vm207, %v528, 0
    %v575 = vsel %vm207, %v529, 0
    %577 = vmatprep.subr.bf16.mxu0 0
    %578 = vmatpush1.bf16.msra.mxu0 %v549
    %579 = vmatprep.subr.bf16.mxu0 0
    %580 = vmatpush1.bf16.msra.mxu0 %v550
    %581 = vmatprep.subr.bf16.mxu0 0
    %582 = vmatpush1.bf16.msra.mxu0 0
    %583 = vmatprep.subr.bf16.mxu0 0
    %584 = vmatpush1.bf16.msra.mxu0 0
    %585 = vmatprep.subr.bf16.mxu0 0
    %586 = vmatpush1.bf16.msra.mxu0 0
    %587 = vmatprep.subr.bf16.mxu0 0
    %588 = vmatpush1.bf16.msra.mxu0 0
    %589 = vmatprep.subr.bf16.mxu0 0
    %590 = vmatpush1.bf16.msra.mxu0 0
    %591 = vmatprep.subr.bf16.mxu0 0
    %592 = vmatpush1.bf16.msra.mxu0 0
    %593 = vmatprep.subr.bf16.mxu0 0
    %594 = vmatpush1.bf16.msra.mxu0 0
    %595 = vmatprep.subr.bf16.mxu0 0
    %596 = vmatpush1.bf16.msra.mxu0 0
    %597 = vmatprep.subr.bf16.mxu0 0
    %598 = vmatpush1.bf16.msra.mxu0 0
    %599 = vmatprep.subr.bf16.mxu0 0
    %600 = vmatpush1.bf16.msra.mxu0 0
    %601 = vmatprep.subr.bf16.mxu0 0
    %602 = vmatpush1.bf16.msra.mxu0 0
    %603 = vmatprep.subr.bf16.mxu0 0
    %604 = vmatpush1.bf16.msra.mxu0 0
    %605 = vmatprep.subr.bf16.mxu0 0
    %606 = vmatpush1.bf16.msra.mxu0 0
    %607 = vmatprep.subr.bf16.mxu0 0
    %608 = vmatpush1.bf16.msra.mxu0 0
    %609 = vmatprep.mubr.bf16.mxu0 0
    %610 = vmatmul.mubr.bf16.gmra.mrb[0].mxu0 %v554
    %v611 = vpop.f32.mrb[0].mxu0
    %v612 = vadd.f32 %v539, %v611
    %v613 = vpop.f32.mrb[0].mxu0
    %v614 = vpop.f32.mrb[0].mxu0
    %v615 = vadd.f32 %v539, %v614
    %v616 = vpop.f32.mrb[0].mxu0
    %617 = vmatprep.mubr.bf16.mxu0 0
    %618 = vmatmul.mubr.bf16.gmra.mrb[0].mxu0 %v557
    %v619 = vpop.f32.mrb[0].mxu0
    %v620 = vadd.f32 %v539, %v619
    %v621 = vpop.f32.mrb[0].mxu0
    %v622 = vpop.f32.mrb[0].mxu0
    %v623 = vadd.f32 %v539, %v622
    %v624 = vpop.f32.mrb[0].mxu0
    %625 = vmatprep.mubr.bf16.mxu0 0
    %626 = vmatmul.mubr.bf16.gmra.mrb[0].mxu0 %v560
    %v627 = vpop.f32.mrb[0].mxu0
    %v628 = vadd.f32 %v539, %v627
    %v629 = vpop.f32.mrb[0].mxu0
    %v630 = vpop.f32.mrb[0].mxu0
    %v631 = vadd.f32 %v539, %v630
    %v632 = vpop.f32.mrb[0].mxu0
    %633 = vmatprep.mubr.bf16.mxu0 0
    %634 = vmatmul.mubr.bf16.gmra.mrb[0].mxu0 %v563
    %v635 = vpop.f32.mrb[0].mxu0
    %v636 = vadd.f32 %v539, %v635
    %v637 = vpop.f32.mrb[0].mxu0
    %v638 = vpop.f32.mrb[0].mxu0
    %v639 = vadd.f32 %v539, %v638
    %v640 = vpop.f32.mrb[0].mxu0
    %641 = vmatprep.mubr.bf16.mxu0 0
    %642 = vmatmul.mubr.bf16.gmra.mrb[0].mxu0 %v566
    %v643 = vpop.f32.mrb[0].mxu0
    %v644 = vadd.f32 %v539, %v643
    %v645 = vpop.f32.mrb[0].mxu0
    %v646 = vpop.f32.mrb[0].mxu0
    %v647 = vadd.f32 %v539, %v646
    %v648 = vpop.f32.mrb[0].mxu0
    %649 = vmatprep.mubr.bf16.mxu0 0
    %650 = vmatmul.mubr.bf16.gmra.mrb[0].mxu0 %v569
    %v651 = vpop.f32.mrb[0].mxu0
    %v652 = vadd.f32 %v539, %v651
    %v653 = vpop.f32.mrb[0].mxu0
    %v654 = vpop.f32.mrb[0].mxu0
    %v655 = vadd.f32 %v539, %v654
    %v656 = vpop.f32.mrb[0].mxu0
    %657 = vmatprep.mubr.bf16.mxu0 0
    %658 = vmatmul.mubr.bf16.gmra.mrb[0].mxu0 %v572
    %v659 = vpop.f32.mrb[0].mxu0
    %v660 = vadd.f32 %v539, %v659
    %v661 = vpop.f32.mrb[0].mxu0
    %v662 = vpop.f32.mrb[0].mxu0
    %v663 = vadd.f32 %v539, %v662
    %v664 = vpop.f32.mrb[0].mxu0
    %665 = vmatprep.mubr.bf16.mxu0 0
    %666 = vmatmul.mubr.bf16.gmra.mrb[0].mxu0 %v575
    %v667 = vpop.f32.mrb[0].mxu0
    %v668 = vadd.f32 %v539, %v667
    %v669 = vpop.f32.mrb[0].mxu0
    %v670 = vpop.f32.mrb[0].mxu0
    %v671 = vadd.f32 %v539, %v670
    %v672 = vpop.f32.mrb[0].mxu0
    %673 = vdwg.mxu0
    %v674 = vld [vmem:[%s5] sm:$0xf]
    %v675 = vld [vmem:[%s5 + $0x4] sm:$0xf]
    %v676 = vld [vmem:[%s5 + $0x8] sm:$0xf]
    %v677 = vld [vmem:[%s5 + $0xc] sm:$0xf]
    %v678 = vld [vmem:[%s6] sm:$0x1]
    %v680 = vlaneseq
    %v681 = vshrl.u32 %v680, 7
    %v682 = vsub.s32 0, %v681
    %v683 = vrot.slane %v678, %v682
    %v689 = vunpack.c.l.b16 %v674
    %v690 = vunpack.c.l.b16 %v675
    %v691 = vunpack.c.l.b16 %v676
    %v692 = vunpack.c.l.b16 %v677
    %v693 = vpack.c.b16 %v690, %v689
    %v694 = vpack.c.b16 %v692, %v691
    %697 = vmatprep.subr.bf16.mxu0 0
    %698 = vmatpush1.bf16.msra.mxu0 %v693
    %699 = vmatprep.subr.bf16.mxu0 0
    %700 = vmatpush1.bf16.msra.mxu0 %v694
    %701 = vmatprep.subr.bf16.mxu0 0
    %702 = vmatpush1.bf16.msra.mxu0 0
    %703 = vmatprep.subr.bf16.mxu0 0
    %704 = vmatpush1.bf16.msra.mxu0 0
    %705 = vmatprep.subr.bf16.mxu0 0
    %706 = vmatpush1.bf16.msra.mxu0 0
    %707 = vmatprep.subr.bf16.mxu0 0
    %708 = vmatpush1.bf16.msra.mxu0 0
    %709 = vmatprep.subr.bf16.mxu0 0
    %710 = vmatpush1.bf16.msra.mxu0 0
    %711 = vmatprep.subr.bf16.mxu0 0
    %712 = vmatpush1.bf16.msra.mxu0 0
    %713 = vmatprep.subr.bf16.mxu0 0
    %714 = vmatpush1.bf16.msra.mxu0 0
    %715 = vmatprep.subr.bf16.mxu0 0
    %716 = vmatpush1.bf16.msra.mxu0 0
    %717 = vmatprep.subr.bf16.mxu0 0
    %718 = vmatpush1.bf16.msra.mxu0 0
    %719 = vmatprep.subr.bf16.mxu0 0
    %720 = vmatpush1.bf16.msra.mxu0 0
    %721 = vmatprep.subr.bf16.mxu0 0
    %722 = vmatpush1.bf16.msra.mxu0 0
    %723 = vmatprep.subr.bf16.mxu0 0
    %724 = vmatpush1.bf16.msra.mxu0 0
    %725 = vmatprep.subr.bf16.mxu0 0
    %726 = vmatpush1.bf16.msra.mxu0 0
    %727 = vmatprep.subr.bf16.mxu0 0
    %728 = vmatpush1.bf16.msra.mxu0 0
    %729 = vmatprep.mubr.bf16.mxu0 0
    %730 = vmatmul.mubr.bf16.gmra.mrb[0].mxu0 %v554
    %v731 = vpop.f32.mrb[0].mxu0
    %v732 = vadd.f32 %v683, %v731
    %v733 = vpop.f32.mrb[0].mxu0
    %v734 = vpop.f32.mrb[0].mxu0
    %v735 = vadd.f32 %v683, %v734
    %v736 = vpop.f32.mrb[0].mxu0
    %737 = vmatprep.mubr.bf16.mxu0 0
    %738 = vmatmul.mubr.bf16.gmra.mrb[0].mxu0 %v557
    %v739 = vpop.f32.mrb[0].mxu0
    %v740 = vadd.f32 %v683, %v739
    %v741 = vpop.f32.mrb[0].mxu0
    %v742 = vpop.f32.mrb[0].mxu0
    %v743 = vadd.f32 %v683, %v742
    %v744 = vpop.f32.mrb[0].mxu0
    %745 = vmatprep.mubr.bf16.mxu0 0
    %746 = vmatmul.mubr.bf16.gmra.mrb[0].mxu0 %v560
    %v747 = vpop.f32.mrb[0].mxu0
    %v748 = vadd.f32 %v683, %v747
    %v749 = vpop.f32.mrb[0].mxu0
    %v750 = vpop.f32.mrb[0].mxu0
    %v751 = vadd.f32 %v683, %v750
    %v752 = vpop.f32.mrb[0].mxu0
    %753 = vmatprep.mubr.bf16.mxu0 0
    %754 = vmatmul.mubr.bf16.gmra.mrb[0].mxu0 %v563
    %v755 = vpop.f32.mrb[0].mxu0
    %v756 = vadd.f32 %v683, %v755
    %v757 = vpop.f32.mrb[0].mxu0
    %v758 = vpop.f32.mrb[0].mxu0
    %v759 = vadd.f32 %v683, %v758
    %v760 = vpop.f32.mrb[0].mxu0
    %761 = vmatprep.mubr.bf16.mxu0 0
    %762 = vmatmul.mubr.bf16.gmra.mrb[0].mxu0 %v566
    %v763 = vpop.f32.mrb[0].mxu0
    %v764 = vadd.f32 %v683, %v763
    %v765 = vpop.f32.mrb[0].mxu0
    %v766 = vpop.f32.mrb[0].mxu0
    %v767 = vadd.f32 %v683, %v766
    %v768 = vpop.f32.mrb[0].mxu0
    %769 = vmatprep.mubr.bf16.mxu0 0
    %770 = vmatmul.mubr.bf16.gmra.mrb[0].mxu0 %v569
    %v771 = vpop.f32.mrb[0].mxu0
    %v772 = vadd.f32 %v683, %v771
    %v773 = vpop.f32.mrb[0].mxu0
    %v774 = vpop.f32.mrb[0].mxu0
    %v775 = vadd.f32 %v683, %v774
    %v776 = vpop.f32.mrb[0].mxu0
    %777 = vmatprep.mubr.bf16.mxu0 0
    %778 = vmatmul.mubr.bf16.gmra.mrb[0].mxu0 %v572
    %v779 = vpop.f32.mrb[0].mxu0
    %v780 = vadd.f32 %v683, %v779
    %v781 = vpop.f32.mrb[0].mxu0
    %v782 = vpop.f32.mrb[0].mxu0
    %v783 = vadd.f32 %v683, %v782
    %v784 = vpop.f32.mrb[0].mxu0
    %785 = vmatprep.mubr.bf16.mxu0 0
    %786 = vmatmul.mubr.bf16.gmra.mrb[0].mxu0 %v575
    %v787 = vpop.f32.mrb[0].mxu0
    %v788 = vadd.f32 %v683, %v787
    %v789 = vpop.f32.mrb[0].mxu0
    %v790 = vpop.f32.mrb[0].mxu0
    %v791 = vadd.f32 %v683, %v790
    %v792 = vpop.f32.mrb[0].mxu0
    %793 = vdwg.mxu0
    %v794 = vld [vmem:[%s7] sm:$0xf]
    %v795 = vld [vmem:[%s7 + $0x4] sm:$0xf]
    %v796 = vld [vmem:[%s7 + $0x8] sm:$0xf]
    %v797 = vld [vmem:[%s7 + $0xc] sm:$0xf]
    %v798 = vld [vmem:[%s8] sm:$0x1]
    %v800 = vlaneseq
    %v801 = vshrl.u32 %v800, 7
    %v802 = vsub.s32 0, %v801
    %v803 = vrot.slane %v798, %v802
    %v809 = vunpack.c.l.b16 %v794
    %v810 = vunpack.c.l.b16 %v795
    %v811 = vunpack.c.l.b16 %v796
    %v812 = vunpack.c.l.b16 %v797
    %v813 = vpack.c.b16 %v810, %v809
    %v814 = vpack.c.b16 %v812, %v811
    %817 = vmatprep.subr.bf16.mxu0 0
    %818 = vmatpush1.bf16.msra.mxu0 %v813
    %819 = vmatprep.subr.bf16.mxu0 0
    %820 = vmatpush1.bf16.msra.mxu0 %v814
    %821 = vmatprep.subr.bf16.mxu0 0
    %822 = vmatpush1.bf16.msra.mxu0 0
    %823 = vmatprep.subr.bf16.mxu0 0
    %824 = vmatpush1.bf16.msra.mxu0 0
    %825 = vmatprep.subr.bf16.mxu0 0
    %826 = vmatpush1.bf16.msra.mxu0 0
    %827 = vmatprep.subr.bf16.mxu0 0
    %828 = vmatpush1.bf16.msra.mxu0 0
    %829 = vmatprep.subr.bf16.mxu0 0
    %830 = vmatpush1.bf16.msra.mxu0 0
    %831 = vmatprep.subr.bf16.mxu0 0
    %832 = vmatpush1.bf16.msra.mxu0 0
    %833 = vmatprep.subr.bf16.mxu0 0
    %834 = vmatpush1.bf16.msra.mxu0 0
    %835 = vmatprep.subr.bf16.mxu0 0
    %836 = vmatpush1.bf16.msra.mxu0 0
    %837 = vmatprep.subr.bf16.mxu0 0
    %838 = vmatpush1.bf16.msra.mxu0 0
    %839 = vmatprep.subr.bf16.mxu0 0
    %840 = vmatpush1.bf16.msra.mxu0 0
    %841 = vmatprep.subr.bf16.mxu0 0
    %842 = vmatpush1.bf16.msra.mxu0 0
    %843 = vmatprep.subr.bf16.mxu0 0
    %844 = vmatpush1.bf16.msra.mxu0 0
    %845 = vmatprep.subr.bf16.mxu0 0
    %846 = vmatpush1.bf16.msra.mxu0 0
    %847 = vmatprep.subr.bf16.mxu0 0
    %848 = vmatpush1.bf16.msra.mxu0 0
    %849 = vmatprep.mubr.bf16.mxu0 0
    %850 = vmatmul.mubr.bf16.gmra.mrb[0].mxu0 %v554
    %v851 = vpop.f32.mrb[0].mxu0
    %v852 = vadd.f32 %v803, %v851
    %v853 = vpop.f32.mrb[0].mxu0
    %v854 = vpop.f32.mrb[0].mxu0
    %v855 = vadd.f32 %v803, %v854
    %v856 = vpop.f32.mrb[0].mxu0
    %857 = vmatprep.mubr.bf16.mxu0 0
    %858 = vmatmul.mubr.bf16.gmra.mrb[0].mxu0 %v557
    %v859 = vpop.f32.mrb[0].mxu0
    %v860 = vadd.f32 %v803, %v859
    %v861 = vpop.f32.mrb[0].mxu0
    %v862 = vpop.f32.mrb[0].mxu0
    %v863 = vadd.f32 %v803, %v862
    %v864 = vpop.f32.mrb[0].mxu0
    %865 = vmatprep.mubr.bf16.mxu0 0
    %866 = vmatmul.mubr.bf16.gmra.mrb[0].mxu0 %v560
    %v867 = vpop.f32.mrb[0].mxu0
    %v868 = vadd.f32 %v803, %v867
    %v869 = vpop.f32.mrb[0].mxu0
    %v870 = vpop.f32.mrb[0].mxu0
    %v871 = vadd.f32 %v803, %v870
    %v872 = vpop.f32.mrb[0].mxu0
    %873 = vmatprep.mubr.bf16.mxu0 0
    %874 = vmatmul.mubr.bf16.gmra.mrb[0].mxu0 %v563
    %v875 = vpop.f32.mrb[0].mxu0
    %v876 = vadd.f32 %v803, %v875
    %v877 = vpop.f32.mrb[0].mxu0
    %v878 = vpop.f32.mrb[0].mxu0
    %v879 = vadd.f32 %v803, %v878
    %v880 = vpop.f32.mrb[0].mxu0
    %881 = vmatprep.mubr.bf16.mxu0 0
    %882 = vmatmul.mubr.bf16.gmra.mrb[0].mxu0 %v566
    %v883 = vpop.f32.mrb[0].mxu0
    %v884 = vadd.f32 %v803, %v883
    %v885 = vpop.f32.mrb[0].mxu0
    %v886 = vpop.f32.mrb[0].mxu0
    %v887 = vadd.f32 %v803, %v886
    %v888 = vpop.f32.mrb[0].mxu0
    %889 = vmatprep.mubr.bf16.mxu0 0
    %890 = vmatmul.mubr.bf16.gmra.mrb[0].mxu0 %v569
    %v891 = vpop.f32.mrb[0].mxu0
    %v892 = vadd.f32 %v803, %v891
    %v893 = vpop.f32.mrb[0].mxu0
    %v894 = vpop.f32.mrb[0].mxu0
    %v895 = vadd.f32 %v803, %v894
    %v896 = vpop.f32.mrb[0].mxu0
    %897 = vmatprep.mubr.bf16.mxu0 0
    %898 = vmatmul.mubr.bf16.gmra.mrb[0].mxu0 %v572
    %v899 = vpop.f32.mrb[0].mxu0
    %v900 = vadd.f32 %v803, %v899
    %v901 = vpop.f32.mrb[0].mxu0
    %v902 = vpop.f32.mrb[0].mxu0
    %v903 = vadd.f32 %v803, %v902
    %v904 = vpop.f32.mrb[0].mxu0
    %905 = vmatprep.mubr.bf16.mxu0 0
    %906 = vmatmul.mubr.bf16.gmra.mrb[0].mxu0 %v575
    %v907 = vpop.f32.mrb[0].mxu0
    %v908 = vadd.f32 %v803, %v907
    %v909 = vpop.f32.mrb[0].mxu0
    %v910 = vpop.f32.mrb[0].mxu0
    %v911 = vadd.f32 %v803, %v910
    %v912 = vpop.f32.mrb[0].mxu0
    %913 = vdwg.mxu0
    %v914 = vtanh.pop %v732
    %v915 = vtanh.pop %v735
    %v916 = vtanh.pop %v740
    %v917 = vtanh.pop %v743
    %v918 = vtanh.pop %v748
    %v919 = vtanh.pop %v751
    %v920 = vtanh.pop %v756
    %v921 = vtanh.pop %v759
    %v922 = vtanh.pop %v764
    %v923 = vtanh.pop %v767
    %v924 = vtanh.pop %v772
    %v925 = vtanh.pop %v775
    %v926 = vtanh.pop %v780
    %v927 = vtanh.pop %v783
    %v928 = vtanh.pop %v788
    %v929 = vtanh.pop %v791
    %v930 = vxor.u32 %v852, 2147483648
    %v931 = vxor.u32 %v855, 2147483648
    %v932 = vxor.u32 %v860, 2147483648
    %v933 = vxor.u32 %v863, 2147483648
    %v934 = vxor.u32 %v868, 2147483648
    %v935 = vxor.u32 %v871, 2147483648
    %v936 = vxor.u32 %v876, 2147483648
    %v937 = vxor.u32 %v879, 2147483648
    %v938 = vxor.u32 %v884, 2147483648
    %v939 = vxor.u32 %v887, 2147483648
    %v940 = vxor.u32 %v892, 2147483648
    %v941 = vxor.u32 %v895, 2147483648
    %v942 = vxor.u32 %v900, 2147483648
    %v943 = vxor.u32 %v903, 2147483648
    %v944 = vxor.u32 %v908, 2147483648
    %v945 = vxor.u32 %v911, 2147483648
    %v946 = vmul.f32 %v930, 1.442695
    %v947 = vpow.pop %v946
    %v948 = vmul.f32 %v931, 1.442695
    %v949 = vpow.pop %v948
    %v950 = vmul.f32 %v932, 1.442695
    %v951 = vpow.pop %v950
    %v952 = vmul.f32 %v933, 1.442695
    %v953 = vpow.pop %v952
    %v954 = vmul.f32 %v934, 1.442695
    %v955 = vpow.pop %v954
    %v956 = vmul.f32 %v935, 1.442695
    %v957 = vpow.pop %v956
    %v958 = vmul.f32 %v936, 1.442695
    %v959 = vpow.pop %v958
    %v960 = vmul.f32 %v937, 1.442695
    %v961 = vpow.pop %v960
    %v962 = vmul.f32 %v938, 1.442695
    %v963 = vpow.pop %v962
    %v964 = vmul.f32 %v939, 1.442695
    %v965 = vpow.pop %v964
    %v966 = vmul.f32 %v940, 1.442695
    %v967 = vpow.pop %v966
    %v968 = vmul.f32 %v941, 1.442695
    %v969 = vpow.pop %v968
    %v970 = vmul.f32 %v942, 1.442695
    %v971 = vpow.pop %v970
    %v972 = vmul.f32 %v943, 1.442695
    %v973 = vpow.pop %v972
    %v974 = vmul.f32 %v944, 1.442695
    %v975 = vpow.pop %v974
    %v976 = vmul.f32 %v945, 1.442695
    %v977 = vpow.pop %v976
    %v978 = vadd.f32 %v947, 1.0
    %v979 = vadd.f32 %v949, 1.0
    %v980 = vadd.f32 %v951, 1.0
    %v981 = vadd.f32 %v953, 1.0
    %v982 = vadd.f32 %v955, 1.0
    %v983 = vadd.f32 %v957, 1.0
    %v984 = vadd.f32 %v959, 1.0
    %v985 = vadd.f32 %v961, 1.0
    %v986 = vadd.f32 %v963, 1.0
    %v987 = vadd.f32 %v965, 1.0
    %v988 = vadd.f32 %v967, 1.0
    %v989 = vadd.f32 %v969, 1.0
    %v990 = vadd.f32 %v971, 1.0
    %v991 = vadd.f32 %v973, 1.0
    %v992 = vadd.f32 %v975, 1.0
    %v993 = vadd.f32 %v977, 1.0
    %v994 = vrcp.pop %v978
    %v995 = vmul.f32 1.0, %v994
    %v996 = vrcp.pop %v979
    %v997 = vmul.f32 1.0, %v996
    %v998 = vrcp.pop %v980
    %v999 = vmul.f32 1.0, %v998
    %v1000 = vrcp.pop %v981
    %v1001 = vmul.f32 1.0, %v1000
    %v1002 = vrcp.pop %v982
    %v1003 = vmul.f32 1.0, %v1002
    %v1004 = vrcp.pop %v983
    %v1005 = vmul.f32 1.0, %v1004
    %v1006 = vrcp.pop %v984
    %v1007 = vmul.f32 1.0, %v1006
    %v1008 = vrcp.pop %v985
    %v1009 = vmul.f32 1.0, %v1008
    %v1010 = vrcp.pop %v986
    %v1011 = vmul.f32 1.0, %v1010
    %v1012 = vrcp.pop %v987
    %v1013 = vmul.f32 1.0, %v1012
    %v1014 = vrcp.pop %v988
    %v1015 = vmul.f32 1.0, %v1014
    %v1016 = vrcp.pop %v989
    %v1017 = vmul.f32 1.0, %v1016
    %v1018 = vrcp.pop %v990
    %v1019 = vmul.f32 1.0, %v1018
    %v1020 = vrcp.pop %v991
    %v1021 = vmul.f32 1.0, %v1020
    %v1022 = vrcp.pop %v992
    %v1023 = vmul.f32 1.0, %v1022
    %v1024 = vrcp.pop %v993
    %v1025 = vmul.f32 1.0, %v1024
    %v1026 = vmul.f32 %v914, %v995
    %v1027 = vmul.f32 %v915, %v997
    %v1028 = vmul.f32 %v916, %v999
    %v1029 = vmul.f32 %v917, %v1001
    %v1030 = vmul.f32 %v918, %v1003
    %v1031 = vmul.f32 %v919, %v1005
    %v1032 = vmul.f32 %v920, %v1007
    %v1033 = vmul.f32 %v921, %v1009
    %v1034 = vmul.f32 %v922, %v1011
    %v1035 = vmul.f32 %v923, %v1013
    %v1036 = vmul.f32 %v924, %v1015
    %v1037 = vmul.f32 %v925, %v1017
    %v1038 = vmul.f32 %v926, %v1019
    %v1039 = vmul.f32 %v927, %v1021
    %v1040 = vmul.f32 %v928, %v1023
    %v1041 = vmul.f32 %v929, %v1025
    %v1042 = vld [vmem:[%s9] sm:$0x1]
    %v1044 = vlaneseq
    %v1045 = vshrl.u32 %v1044, 7
    %v1046 = vsub.s32 0, %v1045
    %v1047 = vrot.slane %v1042, %v1046
    %v1049 = vmul.f32 %v1026, %v1047
    %v1050 = vmul.f32 %v1027, %v1047
    %v1051 = vmul.f32 %v1028, %v1047
    %v1052 = vmul.f32 %v1029, %v1047
    %v1053 = vmul.f32 %v1030, %v1047
    %v1054 = vmul.f32 %v1031, %v1047
    %v1055 = vmul.f32 %v1032, %v1047
    %v1056 = vmul.f32 %v1033, %v1047
    %v1057 = vmul.f32 %v1034, %v1047
    %v1058 = vmul.f32 %v1035, %v1047
    %v1059 = vmul.f32 %v1036, %v1047
    %v1060 = vmul.f32 %v1037, %v1047
    %v1061 = vmul.f32 %v1038, %v1047
    %v1062 = vmul.f32 %v1039, %v1047
    %v1063 = vmul.f32 %v1040, %v1047
    %v1064 = vmul.f32 %v1041, %v1047
    %v1065 = vsel %vm361, %v1049, 0.0
    %1066 = vadd.xlane.f32.xlu0 %v1065
    %v1067 = vpop.xlane.xlu0 %1066
    %v1068 = vsel %vm361, %v1050, 0.0
    %1069 = vadd.xlane.f32.xlu0 %v1068
    %v1070 = vpop.xlane.xlu0 %1069
    %v1071 = vsel %vm361, %v1051, 0.0
    %1072 = vadd.xlane.f32.xlu0 %v1071
    %v1073 = vpop.xlane.xlu0 %1072
    %v1074 = vsel %vm361, %v1052, 0.0
    %1075 = vadd.xlane.f32.xlu0 %v1074
    %v1076 = vpop.xlane.xlu0 %1075
    %v1077 = vsel %vm361, %v1053, 0.0
    %1078 = vadd.xlane.f32.xlu0 %v1077
    %v1079 = vpop.xlane.xlu0 %1078
    %v1080 = vsel %vm361, %v1054, 0.0
    %1081 = vadd.xlane.f32.xlu0 %v1080
    %v1082 = vpop.xlane.xlu0 %1081
    %v1083 = vsel %vm361, %v1055, 0.0
    %1084 = vadd.xlane.f32.xlu0 %v1083
    %v1085 = vpop.xlane.xlu0 %1084
    %v1086 = vsel %vm361, %v1056, 0.0
    %1087 = vadd.xlane.f32.xlu0 %v1086
    %v1088 = vpop.xlane.xlu0 %1087
    %v1089 = vsel %vm361, %v1057, 0.0
    %1090 = vadd.xlane.f32.xlu0 %v1089
    %v1091 = vpop.xlane.xlu0 %1090
    %v1092 = vsel %vm361, %v1058, 0.0
    %1093 = vadd.xlane.f32.xlu0 %v1092
    %v1094 = vpop.xlane.xlu0 %1093
    %v1095 = vsel %vm361, %v1059, 0.0
    %1096 = vadd.xlane.f32.xlu0 %v1095
    %v1097 = vpop.xlane.xlu0 %1096
    %v1098 = vsel %vm361, %v1060, 0.0
    %1099 = vadd.xlane.f32.xlu0 %v1098
    %v1100 = vpop.xlane.xlu0 %1099
    %v1101 = vsel %vm361, %v1061, 0.0
    %1102 = vadd.xlane.f32.xlu0 %v1101
    %v1103 = vpop.xlane.xlu0 %1102
    %v1104 = vsel %vm361, %v1062, 0.0
    %1105 = vadd.xlane.f32.xlu0 %v1104
    %v1106 = vpop.xlane.xlu0 %1105
    %v1107 = vsel %vm361, %v1063, 0.0
    %1108 = vadd.xlane.f32.xlu0 %v1107
    %v1109 = vpop.xlane.xlu0 %1108
    %v1110 = vsel %vm361, %v1064, 0.0
    %1111 = vadd.xlane.f32.xlu0 %v1110
    %v1112 = vpop.xlane.xlu0 %1111
    %1113 = vrot.lane.b32.xlu0 %v693, 112
    %v1114 = vpop.permute.xlu0 %1113
    %1115 = vrot.lane.b32.xlu0 %v694, 112
    %v1116 = vpop.permute.xlu0 %1115
    %1119 = vrot.lane.b32.xlu0 %v683, 112
    %v1120 = vpop.permute.xlu0 %1119
    %1122 = vmatprep.subr.bf16.mxu0 0
    %1123 = vmatpush1.bf16.msra.mxu0 %v1114
    %1124 = vmatprep.subr.bf16.mxu0 0
    %1125 = vmatpush1.bf16.msra.mxu0 %v1116
    %1126 = vmatprep.subr.bf16.mxu0 0
    %1127 = vmatpush1.bf16.msra.mxu0 0
    %1128 = vmatprep.subr.bf16.mxu0 0
    %1129 = vmatpush1.bf16.msra.mxu0 0
    %1130 = vmatprep.subr.bf16.mxu0 0
    %1131 = vmatpush1.bf16.msra.mxu0 0
    %1132 = vmatprep.subr.bf16.mxu0 0
    %1133 = vmatpush1.bf16.msra.mxu0 0
    %1134 = vmatprep.subr.bf16.mxu0 0
    %1135 = vmatpush1.bf16.msra.mxu0 0
    %1136 = vmatprep.subr.bf16.mxu0 0
    %1137 = vmatpush1.bf16.msra.mxu0 0
    %1138 = vmatprep.subr.bf16.mxu0 0
    %1139 = vmatpush1.bf16.msra.mxu0 0
    %1140 = vmatprep.subr.bf16.mxu0 0
    %1141 = vmatpush1.bf16.msra.mxu0 0
    %1142 = vmatprep.subr.bf16.mxu0 0
    %1143 = vmatpush1.bf16.msra.mxu0 0
    %1144 = vmatprep.subr.bf16.mxu0 0
    %1145 = vmatpush1.bf16.msra.mxu0 0
    %1146 = vmatprep.subr.bf16.mxu0 0
    %1147 = vmatpush1.bf16.msra.mxu0 0
    %1148 = vmatprep.subr.bf16.mxu0 0
    %1149 = vmatpush1.bf16.msra.mxu0 0
    %1150 = vmatprep.subr.bf16.mxu0 0
    %1151 = vmatpush1.bf16.msra.mxu0 0
    %1152 = vmatprep.subr.bf16.mxu0 0
    %1153 = vmatpush1.bf16.msra.mxu0 0
    %1154 = vmatprep.mubr.bf16.mxu0 0
    %1155 = vmatmul.mubr.bf16.gmra.mrb[0].mxu0 %v554
    %v1156 = vpop.f32.mrb[0].mxu0
    %v1157 = vadd.f32 %v1120, %v1156
    %v1158 = vpop.f32.mrb[0].mxu0
    %v1159 = vpop.f32.mrb[0].mxu0
    %v1160 = vadd.f32 %v1120, %v1159
    %v1161 = vpop.f32.mrb[0].mxu0
    %1162 = vmatprep.mubr.bf16.mxu0 0
    %1163 = vmatmul.mubr.bf16.gmra.mrb[0].mxu0 %v557
    %v1164 = vpop.f32.mrb[0].mxu0
    %v1165 = vadd.f32 %v1120, %v1164
    %v1166 = vpop.f32.mrb[0].mxu0
    %v1167 = vpop.f32.mrb[0].mxu0
    %v1168 = vadd.f32 %v1120, %v1167
    %v1169 = vpop.f32.mrb[0].mxu0
    %1170 = vmatprep.mubr.bf16.mxu0 0
    %1171 = vmatmul.mubr.bf16.gmra.mrb[0].mxu0 %v560
    %v1172 = vpop.f32.mrb[0].mxu0
    %v1173 = vadd.f32 %v1120, %v1172
    %v1174 = vpop.f32.mrb[0].mxu0
    %v1175 = vpop.f32.mrb[0].mxu0
    %v1176 = vadd.f32 %v1120, %v1175
    %v1177 = vpop.f32.mrb[0].mxu0
    %1178 = vmatprep.mubr.bf16.mxu0 0
    %1179 = vmatmul.mubr.bf16.gmra.mrb[0].mxu0 %v563
    %v1180 = vpop.f32.mrb[0].mxu0
    %v1181 = vadd.f32 %v1120, %v1180
    %v1182 = vpop.f32.mrb[0].mxu0
    %v1183 = vpop.f32.mrb[0].mxu0
    %v1184 = vadd.f32 %v1120, %v1183
    %v1185 = vpop.f32.mrb[0].mxu0
    %1186 = vmatprep.mubr.bf16.mxu0 0
    %1187 = vmatmul.mubr.bf16.gmra.mrb[0].mxu0 %v566
    %v1188 = vpop.f32.mrb[0].mxu0
    %v1189 = vadd.f32 %v1120, %v1188
    %v1190 = vpop.f32.mrb[0].mxu0
    %v1191 = vpop.f32.mrb[0].mxu0
    %v1192 = vadd.f32 %v1120, %v1191
    %v1193 = vpop.f32.mrb[0].mxu0
    %1194 = vmatprep.mubr.bf16.mxu0 0
    %1195 = vmatmul.mubr.bf16.gmra.mrb[0].mxu0 %v569
    %v1196 = vpop.f32.mrb[0].mxu0
    %v1197 = vadd.f32 %v1120, %v1196
    %v1198 = vpop.f32.mrb[0].mxu0
    %v1199 = vpop.f32.mrb[0].mxu0
    %v1200 = vadd.f32 %v1120, %v1199
    %v1201 = vpop.f32.mrb[0].mxu0
    %1202 = vmatprep.mubr.bf16.mxu0 0
    %1203 = vmatmul.mubr.bf16.gmra.mrb[0].mxu0 %v572
    %v1204 = vpop.f32.mrb[0].mxu0
    %v1205 = vadd.f32 %v1120, %v1204
    %v1206 = vpop.f32.mrb[0].mxu0
    %v1207 = vpop.f32.mrb[0].mxu0
    %v1208 = vadd.f32 %v1120, %v1207
    %v1209 = vpop.f32.mrb[0].mxu0
    %1210 = vmatprep.mubr.bf16.mxu0 0
    %1211 = vmatmul.mubr.bf16.gmra.mrb[0].mxu0 %v575
    %v1212 = vpop.f32.mrb[0].mxu0
    %v1213 = vadd.f32 %v1120, %v1212
    %v1214 = vpop.f32.mrb[0].mxu0
    %v1215 = vpop.f32.mrb[0].mxu0
    %v1216 = vadd.f32 %v1120, %v1215
    %v1217 = vpop.f32.mrb[0].mxu0
    %1218 = vdwg.mxu0
    %1219 = vrot.lane.b32.xlu0 %v813, 112
    %v1220 = vpop.permute.xlu0 %1219
    %1221 = vrot.lane.b32.xlu0 %v814, 112
    %v1222 = vpop.permute.xlu0 %1221
    %1225 = vrot.lane.b32.xlu0 %v803, 112
    %v1226 = vpop.permute.xlu0 %1225
    %1228 = vmatprep.subr.bf16.mxu0 0
    %1229 = vmatpush1.bf16.msra.mxu0 %v1220
    %1230 = vmatprep.subr.bf16.mxu0 0
    %1231 = vmatpush1.bf16.msra.mxu0 %v1222
    %1232 = vmatprep.subr.bf16.mxu0 0
    %1233 = vmatpush1.bf16.msra.mxu0 0
    %1234 = vmatprep.subr.bf16.mxu0 0
    %1235 = vmatpush1.bf16.msra.mxu0 0
    %1236 = vmatprep.subr.bf16.mxu0 0
    %1237 = vmatpush1.bf16.msra.mxu0 0
    %1238 = vmatprep.subr.bf16.mxu0 0
    %1239 = vmatpush1.bf16.msra.mxu0 0
    %1240 = vmatprep.subr.bf16.mxu0 0
    %1241 = vmatpush1.bf16.msra.mxu0 0
    %1242 = vmatprep.subr.bf16.mxu0 0
    %1243 = vmatpush1.bf16.msra.mxu0 0
    %1244 = vmatprep.subr.bf16.mxu0 0
    %1245 = vmatpush1.bf16.msra.mxu0 0
    %1246 = vmatprep.subr.bf16.mxu0 0
    %1247 = vmatpush1.bf16.msra.mxu0 0
    %1248 = vmatprep.subr.bf16.mxu0 0
    %1249 = vmatpush1.bf16.msra.mxu0 0
    %1250 = vmatprep.subr.bf16.mxu0 0
    %1251 = vmatpush1.bf16.msra.mxu0 0
    %1252 = vmatprep.subr.bf16.mxu0 0
    %1253 = vmatpush1.bf16.msra.mxu0 0
    %1254 = vmatprep.subr.bf16.mxu0 0
    %1255 = vmatpush1.bf16.msra.mxu0 0
    %1256 = vmatprep.subr.bf16.mxu0 0
    %1257 = vmatpush1.bf16.msra.mxu0 0
    %1258 = vmatprep.subr.bf16.mxu0 0
    %1259 = vmatpush1.bf16.msra.mxu0 0
    %1260 = vmatprep.mubr.bf16.mxu0 0
    %1261 = vmatmul.mubr.bf16.gmra.mrb[0].mxu0 %v554
    %v1262 = vpop.f32.mrb[0].mxu0
    %v1263 = vadd.f32 %v1226, %v1262
    %v1264 = vpop.f32.mrb[0].mxu0
    %v1265 = vpop.f32.mrb[0].mxu0
    %v1266 = vadd.f32 %v1226, %v1265
    %v1267 = vpop.f32.mrb[0].mxu0
    %1268 = vmatprep.mubr.bf16.mxu0 0
    %1269 = vmatmul.mubr.bf16.gmra.mrb[0].mxu0 %v557
    %v1270 = vpop.f32.mrb[0].mxu0
    %v1271 = vadd.f32 %v1226, %v1270
    %v1272 = vpop.f32.mrb[0].mxu0
    %v1273 = vpop.f32.mrb[0].mxu0
    %v1274 = vadd.f32 %v1226, %v1273
    %v1275 = vpop.f32.mrb[0].mxu0
    %1276 = vmatprep.mubr.bf16.mxu0 0
    %1277 = vmatmul.mubr.bf16.gmra.mrb[0].mxu0 %v560
    %v1278 = vpop.f32.mrb[0].mxu0
    %v1279 = vadd.f32 %v1226, %v1278
    %v1280 = vpop.f32.mrb[0].mxu0
    %v1281 = vpop.f32.mrb[0].mxu0
    %v1282 = vadd.f32 %v1226, %v1281
    %v1283 = vpop.f32.mrb[0].mxu0
    %1284 = vmatprep.mubr.bf16.mxu0 0
    %1285 = vmatmul.mubr.bf16.gmra.mrb[0].mxu0 %v563
    %v1286 = vpop.f32.mrb[0].mxu0
    %v1287 = vadd.f32 %v1226, %v1286
    %v1288 = vpop.f32.mrb[0].mxu0
    %v1289 = vpop.f32.mrb[0].mxu0
    %v1290 = vadd.f32 %v1226, %v1289
    %v1291 = vpop.f32.mrb[0].mxu0
    %1292 = vmatprep.mubr.bf16.mxu0 0
    %1293 = vmatmul.mubr.bf16.gmra.mrb[0].mxu0 %v566
    %v1294 = vpop.f32.mrb[0].mxu0
    %v1295 = vadd.f32 %v1226, %v1294
    %v1296 = vpop.f32.mrb[0].mxu0
    %v1297 = vpop.f32.mrb[0].mxu0
    %v1298 = vadd.f32 %v1226, %v1297
    %v1299 = vpop.f32.mrb[0].mxu0
    %1300 = vmatprep.mubr.bf16.mxu0 0
    %1301 = vmatmul.mubr.bf16.gmra.mrb[0].mxu0 %v569
    %v1302 = vpop.f32.mrb[0].mxu0
    %v1303 = vadd.f32 %v1226, %v1302
    %v1304 = vpop.f32.mrb[0].mxu0
    %v1305 = vpop.f32.mrb[0].mxu0
    %v1306 = vadd.f32 %v1226, %v1305
    %v1307 = vpop.f32.mrb[0].mxu0
    %1308 = vmatprep.mubr.bf16.mxu0 0
    %1309 = vmatmul.mubr.bf16.gmra.mrb[0].mxu0 %v572
    %v1310 = vpop.f32.mrb[0].mxu0
    %v1311 = vadd.f32 %v1226, %v1310
    %v1312 = vpop.f32.mrb[0].mxu0
    %v1313 = vpop.f32.mrb[0].mxu0
    %v1314 = vadd.f32 %v1226, %v1313
    %v1315 = vpop.f32.mrb[0].mxu0
    %1316 = vmatprep.mubr.bf16.mxu0 0
    %1317 = vmatmul.mubr.bf16.gmra.mrb[0].mxu0 %v575
    %v1318 = vpop.f32.mrb[0].mxu0
    %v1319 = vadd.f32 %v1226, %v1318
    %v1320 = vpop.f32.mrb[0].mxu0
    %v1321 = vpop.f32.mrb[0].mxu0
    %v1322 = vadd.f32 %v1226, %v1321
    %v1323 = vpop.f32.mrb[0].mxu0
    %1324 = vdwg.mxu0
    %v1325 = vtanh.pop %v1157
    %v1326 = vtanh.pop %v1160
    %v1327 = vtanh.pop %v1165
    %v1328 = vtanh.pop %v1168
    %v1329 = vtanh.pop %v1173
    %v1330 = vtanh.pop %v1176
    %v1331 = vtanh.pop %v1181
    %v1332 = vtanh.pop %v1184
    %v1333 = vtanh.pop %v1189
    %v1334 = vtanh.pop %v1192
    %v1335 = vtanh.pop %v1197
    %v1336 = vtanh.pop %v1200
    %v1337 = vtanh.pop %v1205
    %v1338 = vtanh.pop %v1208
    %v1339 = vtanh.pop %v1213
    %v1340 = vtanh.pop %v1216
    %v1341 = vxor.u32 %v1263, 2147483648
    %v1342 = vxor.u32 %v1266, 2147483648
    %v1343 = vxor.u32 %v1271, 2147483648
    %v1344 = vxor.u32 %v1274, 2147483648
    %v1345 = vxor.u32 %v1279, 2147483648
    %v1346 = vxor.u32 %v1282, 2147483648
    %v1347 = vxor.u32 %v1287, 2147483648
    %v1348 = vxor.u32 %v1290, 2147483648
    %v1349 = vxor.u32 %v1295, 2147483648
    %v1350 = vxor.u32 %v1298, 2147483648
    %v1351 = vxor.u32 %v1303, 2147483648
    %v1352 = vxor.u32 %v1306, 2147483648
    %v1353 = vxor.u32 %v1311, 2147483648
    %v1354 = vxor.u32 %v1314, 2147483648
    %v1355 = vxor.u32 %v1319, 2147483648
    %v1356 = vxor.u32 %v1322, 2147483648
    %v1357 = vmul.f32 %v1341, 1.442695
    %v1358 = vpow.pop %v1357
    %v1359 = vmul.f32 %v1342, 1.442695
    %v1360 = vpow.pop %v1359
    %v1361 = vmul.f32 %v1343, 1.442695
    %v1362 = vpow.pop %v1361
    %v1363 = vmul.f32 %v1344, 1.442695
    %v1364 = vpow.pop %v1363
    %v1365 = vmul.f32 %v1345, 1.442695
    %v1366 = vpow.pop %v1365
    %v1367 = vmul.f32 %v1346, 1.442695
    %v1368 = vpow.pop %v1367
    %v1369 = vmul.f32 %v1347, 1.442695
    %v1370 = vpow.pop %v1369
    %v1371 = vmul.f32 %v1348, 1.442695
    %v1372 = vpow.pop %v1371
    %v1373 = vmul.f32 %v1349, 1.442695
    %v1374 = vpow.pop %v1373
    %v1375 = vmul.f32 %v1350, 1.442695
    %v1376 = vpow.pop %v1375
    %v1377 = vmul.f32 %v1351, 1.442695
    %v1378 = vpow.pop %v1377
    %v1379 = vmul.f32 %v1352, 1.442695
    %v1380 = vpow.pop %v1379
    %v1381 = vmul.f32 %v1353, 1.442695
    %v1382 = vpow.pop %v1381
    %v1383 = vmul.f32 %v1354, 1.442695
    %v1384 = vpow.pop %v1383
    %v1385 = vmul.f32 %v1355, 1.442695
    %v1386 = vpow.pop %v1385
    %v1387 = vmul.f32 %v1356, 1.442695
    %v1388 = vpow.pop %v1387
    %v1389 = vadd.f32 %v1358, 1.0
    %v1390 = vadd.f32 %v1360, 1.0
    %v1391 = vadd.f32 %v1362, 1.0
    %v1392 = vadd.f32 %v1364, 1.0
    %v1393 = vadd.f32 %v1366, 1.0
    %v1394 = vadd.f32 %v1368, 1.0
    %v1395 = vadd.f32 %v1370, 1.0
    %v1396 = vadd.f32 %v1372, 1.0
    %v1397 = vadd.f32 %v1374, 1.0
    %v1398 = vadd.f32 %v1376, 1.0
    %v1399 = vadd.f32 %v1378, 1.0
    %v1400 = vadd.f32 %v1380, 1.0
    %v1401 = vadd.f32 %v1382, 1.0
    %v1402 = vadd.f32 %v1384, 1.0
    %v1403 = vadd.f32 %v1386, 1.0
    %v1404 = vadd.f32 %v1388, 1.0
    %v1405 = vrcp.pop %v1389
    %v1406 = vmul.f32 1.0, %v1405
    %v1407 = vrcp.pop %v1390
    %v1408 = vmul.f32 1.0, %v1407
    %v1409 = vrcp.pop %v1391
    %v1410 = vmul.f32 1.0, %v1409
    %v1411 = vrcp.pop %v1392
    %v1412 = vmul.f32 1.0, %v1411
    %v1413 = vrcp.pop %v1393
    %v1414 = vmul.f32 1.0, %v1413
    %v1415 = vrcp.pop %v1394
    %v1416 = vmul.f32 1.0, %v1415
    %v1417 = vrcp.pop %v1395
    %v1418 = vmul.f32 1.0, %v1417
    %v1419 = vrcp.pop %v1396
    %v1420 = vmul.f32 1.0, %v1419
    %v1421 = vrcp.pop %v1397
    %v1422 = vmul.f32 1.0, %v1421
    %v1423 = vrcp.pop %v1398
    %v1424 = vmul.f32 1.0, %v1423
    %v1425 = vrcp.pop %v1399
    %v1426 = vmul.f32 1.0, %v1425
    %v1427 = vrcp.pop %v1400
    %v1428 = vmul.f32 1.0, %v1427
    %v1429 = vrcp.pop %v1401
    %v1430 = vmul.f32 1.0, %v1429
    %v1431 = vrcp.pop %v1402
    %v1432 = vmul.f32 1.0, %v1431
    %v1433 = vrcp.pop %v1403
    %v1434 = vmul.f32 1.0, %v1433
    %v1435 = vrcp.pop %v1404
    %v1436 = vmul.f32 1.0, %v1435
    %v1437 = vmul.f32 %v1325, %v1406
    %v1438 = vmul.f32 %v1326, %v1408
    %v1439 = vmul.f32 %v1327, %v1410
    %v1440 = vmul.f32 %v1328, %v1412
    %v1441 = vmul.f32 %v1329, %v1414
    %v1442 = vmul.f32 %v1330, %v1416
    %v1443 = vmul.f32 %v1331, %v1418
    %v1444 = vmul.f32 %v1332, %v1420
    %v1445 = vmul.f32 %v1333, %v1422
    %v1446 = vmul.f32 %v1334, %v1424
    %v1447 = vmul.f32 %v1335, %v1426
    %v1448 = vmul.f32 %v1336, %v1428
    %v1449 = vmul.f32 %v1337, %v1430
    %v1450 = vmul.f32 %v1338, %v1432
    %v1451 = vmul.f32 %v1339, %v1434
    %v1452 = vmul.f32 %v1340, %v1436
    %1453 = vrot.lane.b32.xlu0 %v1047, 112
    %v1454 = vpop.permute.xlu0 %1453
    %v1456 = vmul.f32 %v1437, %v1454
    %v1457 = vmul.f32 %v1438, %v1454
    %v1458 = vmul.f32 %v1439, %v1454
    %v1459 = vmul.f32 %v1440, %v1454
    %v1460 = vmul.f32 %v1441, %v1454
    %v1461 = vmul.f32 %v1442, %v1454
    %v1462 = vmul.f32 %v1443, %v1454
    %v1463 = vmul.f32 %v1444, %v1454
    %v1464 = vmul.f32 %v1445, %v1454
    %v1465 = vmul.f32 %v1446, %v1454
    %v1466 = vmul.f32 %v1447, %v1454
    %v1467 = vmul.f32 %v1448, %v1454
    %v1468 = vmul.f32 %v1449, %v1454
    %v1469 = vmul.f32 %v1450, %v1454
    %v1470 = vmul.f32 %v1451, %v1454
    %v1471 = vmul.f32 %v1452, %v1454
    %v1472 = vsel %vm361, %v1456, 0.0
    %1473 = vadd.xlane.f32.xlu0 %v1472
    %v1474 = vpop.xlane.xlu0 %1473
    %v1475 = vsel %vm361, %v1457, 0.0
    %1476 = vadd.xlane.f32.xlu0 %v1475
    %v1477 = vpop.xlane.xlu0 %1476
    %v1478 = vsel %vm361, %v1458, 0.0
    %1479 = vadd.xlane.f32.xlu0 %v1478
    %v1480 = vpop.xlane.xlu0 %1479
    %v1481 = vsel %vm361, %v1459, 0.0
    %1482 = vadd.xlane.f32.xlu0 %v1481
    %v1483 = vpop.xlane.xlu0 %1482
    %v1484 = vsel %vm361, %v1460, 0.0
    %1485 = vadd.xlane.f32.xlu0 %v1484
    %v1486 = vpop.xlane.xlu0 %1485
    %v1487 = vsel %vm361, %v1461, 0.0
    %1488 = vadd.xlane.f32.xlu0 %v1487
    %v1489 = vpop.xlane.xlu0 %1488
    %v1490 = vsel %vm361, %v1462, 0.0
    %1491 = vadd.xlane.f32.xlu0 %v1490
    %v1492 = vpop.xlane.xlu0 %1491
    %v1493 = vsel %vm361, %v1463, 0.0
    %1494 = vadd.xlane.f32.xlu0 %v1493
    %v1495 = vpop.xlane.xlu0 %1494
    %v1496 = vsel %vm361, %v1464, 0.0
    %1497 = vadd.xlane.f32.xlu0 %v1496
    %v1498 = vpop.xlane.xlu0 %1497
    %v1499 = vsel %vm361, %v1465, 0.0
    %1500 = vadd.xlane.f32.xlu0 %v1499
    %v1501 = vpop.xlane.xlu0 %1500
    %v1502 = vsel %vm361, %v1466, 0.0
    %1503 = vadd.xlane.f32.xlu0 %v1502
    %v1504 = vpop.xlane.xlu0 %1503
    %v1505 = vsel %vm361, %v1467, 0.0
    %1506 = vadd.xlane.f32.xlu0 %v1505
    %v1507 = vpop.xlane.xlu0 %1506
    %v1508 = vsel %vm361, %v1468, 0.0
    %1509 = vadd.xlane.f32.xlu0 %v1508
    %v1510 = vpop.xlane.xlu0 %1509
    %v1511 = vsel %vm361, %v1469, 0.0
    %1512 = vadd.xlane.f32.xlu0 %v1511
    %v1513 = vpop.xlane.xlu0 %1512
    %v1514 = vsel %vm361, %v1470, 0.0
    %1515 = vadd.xlane.f32.xlu0 %v1514
    %v1516 = vpop.xlane.xlu0 %1515
    %v1517 = vsel %vm361, %v1471, 0.0
    %1518 = vadd.xlane.f32.xlu0 %v1517
    %v1519 = vpop.xlane.xlu0 %1518
    %vm1520 = vcmask 7168
    %v1521 = vsel %vm1520, %v1067, %v1474
    %v1522 = vsel %vm1520, %v1070, %v1477
    %v1523 = vsel %vm1520, %v1073, %v1480
    %v1524 = vsel %vm1520, %v1076, %v1483
    %v1525 = vsel %vm1520, %v1079, %v1486
    %v1526 = vsel %vm1520, %v1082, %v1489
    %v1527 = vsel %vm1520, %v1085, %v1492
    %v1528 = vsel %vm1520, %v1088, %v1495
    %v1529 = vsel %vm1520, %v1091, %v1498
    %v1530 = vsel %vm1520, %v1094, %v1501
    %v1531 = vsel %vm1520, %v1097, %v1504
    %v1532 = vsel %vm1520, %v1100, %v1507
    %v1533 = vsel %vm1520, %v1103, %v1510
    %v1534 = vsel %vm1520, %v1106, %v1513
    %v1535 = vsel %vm1520, %v1109, %v1516
    %v1536 = vsel %vm1520, %v1112, %v1519
    %v1537 = vld [vmem:[%s10] sm:$0x1]
    %v1539 = vlaneseq
    %v1540 = vshrl.u32 %v1539, 7
    %v1541 = vsub.s32 0, %v1540
    %v1542 = vrot.slane %v1537, %v1541
    %v1544 = vadd.f32 %v1521, %v1542
    %v1545 = vadd.f32 %v1522, %v1542
    %v1546 = vadd.f32 %v1523, %v1542
    %v1547 = vadd.f32 %v1524, %v1542
    %v1548 = vadd.f32 %v1525, %v1542
    %v1549 = vadd.f32 %v1526, %v1542
    %v1550 = vadd.f32 %v1527, %v1542
    %v1551 = vadd.f32 %v1528, %v1542
    %v1552 = vadd.f32 %v1529, %v1542
    %v1553 = vadd.f32 %v1530, %v1542
    %v1554 = vadd.f32 %v1531, %v1542
    %v1555 = vadd.f32 %v1532, %v1542
    %v1556 = vadd.f32 %v1533, %v1542
    %v1557 = vadd.f32 %v1534, %v1542
    %v1558 = vadd.f32 %v1535, %v1542
    %v1559 = vadd.f32 %v1536, %v1542
    %v1560 = vmul.f32 %v1544, 1.442695
    %v1561 = vpow.pop %v1560
    %v1562 = vmul.f32 %v1545, 1.442695
    %v1563 = vpow.pop %v1562
    %v1564 = vmul.f32 %v1546, 1.442695
    %v1565 = vpow.pop %v1564
    %v1566 = vmul.f32 %v1547, 1.442695
    %v1567 = vpow.pop %v1566
    %v1568 = vmul.f32 %v1548, 1.442695
    %v1569 = vpow.pop %v1568
    %v1570 = vmul.f32 %v1549, 1.442695
    %v1571 = vpow.pop %v1570
    %v1572 = vmul.f32 %v1550, 1.442695
    %v1573 = vpow.pop %v1572
    %v1574 = vmul.f32 %v1551, 1.442695
    %v1575 = vpow.pop %v1574
    %v1576 = vmul.f32 %v1552, 1.442695
    %v1577 = vpow.pop %v1576
    %v1578 = vmul.f32 %v1553, 1.442695
    %v1579 = vpow.pop %v1578
    %v1580 = vmul.f32 %v1554, 1.442695
    %v1581 = vpow.pop %v1580
    %v1582 = vmul.f32 %v1555, 1.442695
    %v1583 = vpow.pop %v1582
    %v1584 = vmul.f32 %v1556, 1.442695
    %v1585 = vpow.pop %v1584
    %v1586 = vmul.f32 %v1557, 1.442695
    %v1587 = vpow.pop %v1586
    %v1588 = vmul.f32 %v1558, 1.442695
    %v1589 = vpow.pop %v1588
    %v1590 = vmul.f32 %v1559, 1.442695
    %v1591 = vpow.pop %v1590
    %v1592 = vsel %vm144, %v1561, 0.0
    %v1593 = vsel %vm145, %v1563, 0.0
    %v1594 = vsel %vm146, %v1565, 0.0
    %v1595 = vsel %vm147, %v1567, 0.0
    %v1596 = vsel %vm148, %v1569, 0.0
    %v1597 = vsel %vm149, %v1571, 0.0
    %v1598 = vsel %vm150, %v1573, 0.0
    %v1599 = vsel %vm151, %v1575, 0.0
    %v1600 = vsel %vm152, %v1577, 0.0
    %v1601 = vsel %vm153, %v1579, 0.0
    %v1602 = vsel %vm154, %v1581, 0.0
    %v1603 = vsel %vm155, %v1583, 0.0
    %v1604 = vsel %vm156, %v1585, 0.0
    %v1605 = vsel %vm157, %v1587, 0.0
    %v1606 = vsel %vm158, %v1589, 0.0
    %v1607 = vsel %vm159, %v1591, 0.0
    %v1608 = vmul.f32 %v612, %v1592
    %v1609 = vmul.f32 %v615, %v1593
    %v1610 = vmul.f32 %v620, %v1594
    %v1611 = vmul.f32 %v623, %v1595
    %v1612 = vmul.f32 %v628, %v1596
    %v1613 = vmul.f32 %v631, %v1597
    %v1614 = vmul.f32 %v636, %v1598
    %v1615 = vmul.f32 %v639, %v1599
    %v1616 = vmul.f32 %v644, %v1600
    %v1617 = vmul.f32 %v647, %v1601
    %v1618 = vmul.f32 %v652, %v1602
    %v1619 = vmul.f32 %v655, %v1603
    %v1620 = vmul.f32 %v660, %v1604
    %v1621 = vmul.f32 %v663, %v1605
    %v1622 = vmul.f32 %v668, %v1606
    %v1623 = vmul.f32 %v671, %v1607
    %v1624 = vsel %vm144, %v1608, 0.0
    %v1625 = vsel %vm145, %v1609, 0.0
    %v1626 = vsel %vm146, %v1610, 0.0
    %v1627 = vsel %vm147, %v1611, 0.0
    %v1628 = vsel %vm148, %v1612, 0.0
    %v1629 = vsel %vm149, %v1613, 0.0
    %v1630 = vsel %vm150, %v1614, 0.0
    %v1631 = vsel %vm151, %v1615, 0.0
    %v1632 = vsel %vm152, %v1616, 0.0
    %v1633 = vsel %vm153, %v1617, 0.0
    %v1634 = vsel %vm154, %v1618, 0.0
    %v1635 = vsel %vm155, %v1619, 0.0
    %v1636 = vsel %vm156, %v1620, 0.0
    %v1637 = vsel %vm157, %v1621, 0.0
    %v1638 = vsel %vm158, %v1622, 0.0
    %v1639 = vsel %vm159, %v1623, 0.0
    %1640 = vxpose.xlu0.b32.start [1/16] %v1624, 128
    %1641 = vxpose.xlu0.b32.cont [2/16] %v1625, 128
    %1642 = vxpose.xlu0.b32.cont [3/16] %v1626, 128
    %1643 = vxpose.xlu0.b32.cont [4/16] %v1627, 128
    %1644 = vxpose.xlu0.b32.cont [5/16] %v1628, 128
    %1645 = vxpose.xlu0.b32.cont [6/16] %v1629, 128
    %1646 = vxpose.xlu0.b32.cont [7/16] %v1630, 128
    %1647 = vxpose.xlu0.b32.cont [8/16] %v1631, 128
    %1648 = vxpose.xlu0.b32.cont [9/16] %v1632, 128
    %1649 = vxpose.xlu0.b32.cont [10/16] %v1633, 128
    %1650 = vxpose.xlu0.b32.cont [11/16] %v1634, 128
    %1651 = vxpose.xlu0.b32.cont [12/16] %v1635, 128
    %1652 = vxpose.xlu0.b32.cont [13/16] %v1636, 128
    %1653 = vxpose.xlu0.b32.cont [14/16] %v1637, 128
    %1654 = vxpose.xlu0.b32.cont [15/16] %v1638, 128
    %1655 = vxpose.xlu0.b32.end [16/16] %v1639, 128
    %v1656 = vpop.trf.xlu0
    %v1657 = vpop.trf.xlu0
    %v1658 = vpop.trf.xlu0
    %v1659 = vpop.trf.xlu0
    %v1660 = vpop.trf.xlu0
    %v1661 = vpop.trf.xlu0
    %v1662 = vpop.trf.xlu0
    %v1663 = vpop.trf.xlu0
    %v1664 = vpop.trf.xlu0
    %v1665 = vpop.trf.xlu0
    %v1666 = vpop.trf.xlu0
    %v1667 = vpop.trf.xlu0
    %v1668 = vpop.trf.xlu0
    %v1669 = vpop.trf.xlu0
    %v1670 = vpop.trf.xlu0
    %v1671 = vpop.trf.xlu0
    %1672 = vst [vmem:[#allocation5] sm:$0x3] %v1656
    %vm1673 = vcmask 15360
    %v1674 = vsel %vm1673, %v1624, 0.0
    %v1675 = vsel %vm1673, %v1625, 0.0
    %v1676 = vadd.f32 %v1674, %v1675
    %v1677 = vsel %vm1673, %v1626, 0.0
    %v1678 = vadd.f32 %v1676, %v1677
    %v1679 = vsel %vm1673, %v1627, 0.0
    %v1680 = vadd.f32 %v1678, %v1679
    %v1681 = vsel %vm1673, %v1628, 0.0
    %v1682 = vadd.f32 %v1680, %v1681
    %v1683 = vsel %vm1673, %v1629, 0.0
    %v1684 = vadd.f32 %v1682, %v1683
    %v1685 = vsel %vm1673, %v1630, 0.0
    %v1686 = vadd.f32 %v1684, %v1685
    %v1687 = vsel %vm1673, %v1631, 0.0
    %v1688 = vadd.f32 %v1686, %v1687
    %v1689 = vsel %vm1673, %v1632, 0.0
    %v1690 = vadd.f32 %v1688, %v1689
    %v1691 = vsel %vm1673, %v1633, 0.0
    %v1692 = vadd.f32 %v1690, %v1691
    %v1693 = vsel %vm1673, %v1634, 0.0
    %v1694 = vadd.f32 %v1692, %v1693
    %v1695 = vsel %vm1673, %v1635, 0.0
    %v1696 = vadd.f32 %v1694, %v1695
    %v1697 = vsel %vm1673, %v1636, 0.0
    %v1698 = vadd.f32 %v1696, %v1697
    %v1699 = vsel %vm1673, %v1637, 0.0
    %v1700 = vadd.f32 %v1698, %v1699
    %v1701 = vsel %vm1673, %v1638, 0.0
    %v1702 = vadd.f32 %v1700, %v1701
    %v1703 = vsel %vm1673, %v1639, 0.0
    %v1704 = vadd.f32 %v1702, %v1703
    %v1705 = vrot.slane %v1704, 4
    %v1706 = vadd.f32 %v1704, %v1705
    %v1707 = vrot.slane %v1706, 2
    %v1708 = vadd.f32 %v1706, %v1707
    %v1709 = vrot.slane %v1708, 1
    %v1710 = vadd.f32 %v1708, %v1709
    %v1711 = vsel %vm1673, %v1592, 0.0
    %v1712 = vsel %vm1673, %v1593, 0.0
    %v1713 = vadd.f32 %v1711, %v1712
    %v1714 = vsel %vm1673, %v1594, 0.0
    %v1715 = vadd.f32 %v1713, %v1714
    %v1716 = vsel %vm1673, %v1595, 0.0
    %v1717 = vadd.f32 %v1715, %v1716
    %v1718 = vsel %vm1673, %v1596, 0.0
    %v1719 = vadd.f32 %v1717, %v1718
    %v1720 = vsel %vm1673, %v1597, 0.0
    %v1721 = vadd.f32 %v1719, %v1720
    %v1722 = vsel %vm1673, %v1598, 0.0
    %v1723 = vadd.f32 %v1721, %v1722
    %v1724 = vsel %vm1673, %v1599, 0.0
    %v1725 = vadd.f32 %v1723, %v1724
    %v1726 = vsel %vm1673, %v1600, 0.0
    %v1727 = vadd.f32 %v1725, %v1726
    %v1728 = vsel %vm1673, %v1601, 0.0
    %v1729 = vadd.f32 %v1727, %v1728
    %v1730 = vsel %vm1673, %v1602, 0.0
    %v1731 = vadd.f32 %v1729, %v1730
    %v1732 = vsel %vm1673, %v1603, 0.0
    %v1733 = vadd.f32 %v1731, %v1732
    %v1734 = vsel %vm1673, %v1604, 0.0
    %v1735 = vadd.f32 %v1733, %v1734
    %v1736 = vsel %vm1673, %v1605, 0.0
    %v1737 = vadd.f32 %v1735, %v1736
    %v1738 = vsel %vm1673, %v1606, 0.0
    %v1739 = vadd.f32 %v1737, %v1738
    %v1740 = vsel %vm1673, %v1607, 0.0
    %v1741 = vadd.f32 %v1739, %v1740
    %v1742 = vrot.slane %v1741, 4
    %v1743 = vadd.f32 %v1741, %v1742
    %v1744 = vrot.slane %v1743, 2
    %v1745 = vadd.f32 %v1743, %v1744
    %v1746 = vrot.slane %v1745, 1
    %v1747 = vadd.f32 %v1745, %v1746
    %vm1748 = vcmask 1040384
    %v1749 = vsel %vm1748, %v1710, %v1747
    %vm1750 = vcmask 9216
    %1751 = vst.msk [vmem:[#allocation6] sm:$0x3] %vm1750, %v1749
    // Predicated region
    $region58: #{tpu_custom_call.1} parent=1 // pred_check
      _
    $region59: #{tpu_custom_call.1} parent=1 // pred_check_branch
      %1753 = sbr.rel (0) target = $region61
    $region60: #{tpu_custom_call.1} parent=1 // pred_region
      %s1755 = ssub.s32 32, 32
      %1756 = vsyncadd [#allocation4], %s1755
      %s1758 = sshll.u32 [#allocation5], 4
      %s1759 = int_to_ptr.vmem [resolvable:$true] %s1758
      %1761 = dma.vmem_to_hbm [thread:$0]  %s1759, 32, %s13, [#allocation4]
    $region61: #{tpu_custom_call.1} parent=1 // pred_fallthru
      _
    // Predicated region
    $region62: #{tpu_custom_call.1} parent=1 // pred_check
      _
    $region63: #{tpu_custom_call.1} parent=1 // pred_check_branch
      %1763 = sbr.rel (0) target = $region65
    $region64: #{tpu_custom_call.1} parent=1 // pred_region
      %s1765 = ssub.s32 32, 32
      %1766 = vsyncadd [#allocation7], %s1765
      %s1768 = sshll.u32 [#allocation6], 4
      %s1769 = int_to_ptr.vmem [resolvable:$true] %s1768
      %1771 = dma.vmem_to_hbm [thread:$0]  %s1769, 32, %s14, [#allocation7]
    $region65: #{tpu_custom_call.1} parent=1 // pred_fallthru
      _
    // Predicated region
    $region66: #{tpu_custom_call.1} parent=1 // pred_check
      _
    $region67: #{tpu_custom_call.1} parent=1 // pred_check_branch
      %1773 = sbr.rel (0) target = $region69
    $region68: #{tpu_custom_call.1} parent=1 // pred_region
      %1774 = dma.done [#allocation4], 32
    $region69: #{tpu_custom_call.1} parent=1 // pred_fallthru
      _
    // Predicated region
    $region70: #{tpu_custom_call.1} parent=1 // pred_check
      _
    $region71: #{tpu_custom_call.1} parent=1 // pred_check_branch
      %1776 = sbr.rel (0) target = $region73
    $region72: #{tpu_custom_call.1} parent=1 // pred_region
      %1777 = dma.done [#allocation7], 32
    $region73: #{tpu_custom_call.1} parent=1 // pred_fallthru
      _
    %1778 = vsyncpa [#allocation3], 1
    %1779 = vsyncpa [#allocation4], 1
    %1780 = vsyncpa [#allocation7], 1

</llo_original>
